<compile_context>
chip_gen: v5e
topology: v5e:2x2
jax: 0.10.0
libtpu: 0.0.40
codegen_flags: <defaults>
</compile_context>

<pallas_src>
import jax
import jax.numpy as jnp
from jax import lax
from jax.experimental import pallas as pl
from jax.experimental.pallas import tpu as pltpu

_BN_EPS = 1e-5

# Eigen / XLA f32 rational erf coefficients (same approximation XLA uses for f32 erf).
_ERF_ALPHA = (-2.72614225801306e-10, 2.77068142495902e-08, -2.10102402082508e-06,
              -5.69250639462346e-05, -7.34990630326855e-04, -2.95459980854025e-03,
              -1.60960333262415e-02)
_ERF_BETA = (-1.45660718464996e-05, -2.13374055278905e-04, -1.68282697438203e-03,
             -7.37332916720468e-03, -1.42647390514189e-02)


def _gelu_exact(x):
    """0.5*x*(1+erf(x/sqrt(2))) with the XLA f32 rational erf.  Exact division —
    the approx-reciprocal version of this cost ~1e-2 of end-to-end error."""
    z = jnp.clip(x * 0.7071067811865476, -4.0, 4.0)
    z2 = z * z
    num = jnp.full_like(z2, _ERF_ALPHA[0])
    for c in _ERF_ALPHA[1:]:
        num = num * z2 + c
    num = num * z
    den = jnp.full_like(z2, _ERF_BETA[0])
    for c in _ERF_BETA[1:]:
        den = den * z2 + c
    return 0.5 * x * (1.0 + num / den)


# ------------------------------ fused U_decoder kernel -----------------------------
def u_decoder_kernel(xin_ref, r0_ref, r1_ref, d0_ref, d1_ref, bup_ref,
                     sm1_ref, sp1_ref, bw_ref, g_ref, t_ref, qn_ref, out_ref):
    """Whole U_decoder forward on lane-dense slabs.

    xin_ref : (N*H, W*Cin)        input rows (n,i), lanes (j, c_in)
    r0/r1   : (N*H2, N*H)         0/1 row-scatter matrices (2x2 sub-pixel interleave)
    d0/d1   : (W*Cin, W2*C)       deconv weights for output-row parity di (dj folded in)
    bup_ref : (1, W2*C)           deconv bias tiled over lanes
    sm1/sp1 : (N*H2, N*H2)        0/1 row-shift matrices (H taps, zero at image edges)
    bw_ref  : (4, 3, W2*C, W2*C)  per-layer, per-kh banded conv weights (kw + W pad folded)
    g_ref/t_ref : (4, W2*C)       BN gamma / beta tiled over lanes
    qn_ref  : (W2*C, W2*C)        channel-pooling matrix (0/1 scaled by 1/(N*H2*W2))
    out_ref : (N*H2, W2*C)        lane-dense output slab
    """
    dot = lambda a, b: jnp.dot(a, b, preferred_element_type=jnp.float32)

    xin = xin_ref[...]
    # ConvTranspose2d(k=2, s=2) + sub-pixel interleave: 4 MXU matmuls, no relayout.
    h = (dot(r0_ref[...], dot(xin, d0_ref[...]))
         + dot(r1_ref[...], dot(xin, d1_ref[...]))
         + bup_ref[...])                                       # (N*H2, W2*C)

    sm1 = sm1_ref[...]
    sp1 = sp1_ref[...]
    qn = qn_ref[...]
    g_all = g_ref[...]
    t_all = t_ref[...]

    # 2 ConvBlocks = 4x (conv3x3 -> BN(batch stats) -> GELU), fully fused.
    for layer in range(4):
        hm1 = dot(sm1, h)                                      # row above (0 at top edge)
        hp1 = dot(sp1, h)                                      # row below (0 at bottom edge)
        acc = (dot(hm1, bw_ref[layer, 0])
               + dot(h,   bw_ref[layer, 1])
               + dot(hp1, bw_ref[layer, 2]))                   # (N*H2, W2*C)
        # BatchNorm: conv bias omitted (exact no-op under batch-stat BN); per-channel
        # mean / E[x^2] pooled on the MXU and broadcast back to the (j, c) lane layout.
        mu = jnp.sum(dot(acc, qn), axis=0, keepdims=True)
        ex2 = jnp.sum(dot(acc * acc, qn), axis=0, keepdims=True)
        var = ex2 - mu * mu
        scale = g_all[layer:layer + 1, :] * lax.rsqrt(var + _BN_EPS)
        shift = t_all[layer:layer + 1, :] - mu * scale
        h = _gelu_exact(acc * scale + shift)

    out_ref[...] = h


# ------------------------------------ wrapper --------------------------------------
def u_decoder_forward(x_nchw, skip_nchw, params):
    """U_decoder forward: (N,Cx,H,W), (N,Cs,H,W) -> (N,Cout,2H,2W) in NCHW."""
    N, Cx, H, W = x_nchw.shape
    Cs = skip_nchw.shape[1]
    Cin = Cx + Cs
    C = params["w_up"].shape[1]
    H2, W2 = 2 * H, 2 * W
    f32 = jnp.float32
    hi = lax.Precision.HIGHEST   # keep the (tiny) weight-prep contractions exact in f32

    # ---- activation glue: NCHW -> lane-dense (N*H, W*Cin) slab ----
    xs = jnp.concatenate([x_nchw, skip_nchw], axis=1).astype(f32)
    xin = jnp.transpose(xs, (0, 2, 3, 1)).reshape(N * H, W * Cin)

    # ---- constant operator matrices (weight prep; folded once under jit) ----
    w_up = params["w_up"].astype(f32)                                  # (Cin, C, 2, 2)
    p_place = jnp.stack([jax.nn.one_hot(2 * jnp.arange(W) + dj, W2, dtype=f32)
                         for dj in (0, 1)])                            # (2, W, W2)
    d_mats = [jnp.einsum("djm,cod->jcmo", p_place, w_up[:, :, di, :],
                         precision=hi).reshape(W * Cin, W2 * C)
              for di in (0, 1)]
    bup_lane = jnp.tile(params["b_up"].astype(f32), W2).reshape(1, W2 * C)

    rows = jnp.arange(N * H)
    tgt = (rows // H) * H2 + 2 * (rows % H)
    r0 = jax.nn.one_hot(tgt, N * H2, dtype=f32).T                      # (N*H2, N*H)
    r1 = jax.nn.one_hot(tgt + 1, N * H2, dtype=f32).T

    eye_n = jnp.eye(N, dtype=f32)
    sm1 = jnp.kron(eye_n, jnp.eye(H2, k=-1, dtype=f32))                # picks row above
    sp1 = jnp.kron(eye_n, jnp.eye(H2, k=1, dtype=f32))                 # picks row below

    # banded conv weights: for tap kw, out[j] reads in[j + kw - 1]  ->  eye(k = 1 - kw)
    g_band = jnp.stack([jnp.eye(W2, k=1 - kw, dtype=f32) for kw in range(3)])
    bw = jnp.stack([
        jnp.stack([jnp.einsum("kpm,kio->pimo", g_band,
                              params[f"w{i}"].astype(f32)[kh],
                              precision=hi).reshape(W2 * C, W2 * C)
                   for kh in range(3)])
        for i in (1, 2, 3, 4)])                                        # (4, 3, W2*C, W2*C)

    g_lane = jnp.stack([jnp.tile(params[f"g{i}"].astype(f32), W2) for i in (1, 2, 3, 4)])
    t_lane = jnp.stack([jnp.tile(params[f"beta{i}"].astype(f32), W2) for i in (1, 2, 3, 4)])
    qn = jnp.tile(jnp.eye(C, dtype=f32), (W2, W2)) / float(N * H2 * W2)

    vmem = pl.BlockSpec(memory_space=pltpu.MemorySpace.VMEM)
    out2d = pl.pallas_call(
        u_decoder_kernel,
        out_shape=jax.ShapeDtypeStruct((N * H2, W2 * C), f32),
        in_specs=[vmem] * 12,
        out_specs=vmem,
    )(xin, r0, r1, d_mats[0], d_mats[1], bup_lane, sm1, sp1, bw, g_lane, t_lane, qn)

    # free row-major reshape to NHWC, then the unavoidable NCHW boundary transpose
    return jnp.transpose(out2d.reshape(N, H2, W2, C), (0, 3, 1, 2))


# ----------------------------- pure-JAX reference ----------------------------------
def _ref_conv_bn_gelu(h, w, b, g, beta):
    y = lax.conv_general_dilated(h, w, (1, 1), "SAME",
                                 dimension_numbers=("NHWC", "HWIO", "NHWC"),
                                 precision=lax.Precision.HIGHEST)
    y = y + b.reshape(1, 1, 1, -1)
    mu = jnp.mean(y, axis=(0, 1, 2), keepdims=True)
    var = jnp.mean((y - mu) ** 2, axis=(0, 1, 2), keepdims=True)
    y = (y - mu) / jnp.sqrt(var + _BN_EPS)
    y = y * g.reshape(1, 1, 1, -1) + beta.reshape(1, 1, 1, -1)
    return jax.nn.gelu(y, approximate=False)


def reference_forward(x_nchw, skip_nchw, params):
    xs = jnp.concatenate([x_nchw, skip_nchw], axis=1).astype(jnp.float32)
    x = jnp.transpose(xs, (0, 2, 3, 1))                                # NHWC
    # ConvTranspose2d(k=2,s=2): out[n,2i+p,2j+q,o] = sum_c x[n,i,j,c] w[c,o,p,q] + b[o]
    t = jnp.einsum("nijc,copq->nipjqo", x, params["w_up"],
                   precision=lax.Precision.HIGHEST)
    N, H, _, W, _, Cout = t.shape
    h = t.reshape(N, 2 * H, 2 * W, Cout) + params["b_up"].reshape(1, 1, 1, -1)
    for i in (1, 2, 3, 4):
        h = _ref_conv_bn_gelu(h, params[f"w{i}"], params[f"b{i}"],
                              params[f"g{i}"], params[f"beta{i}"])
    return jnp.transpose(h, (0, 3, 1, 2))


# -------------------------------------- main ---------------------------------------
if __name__ == "__main__":
    N, Cx, Cs, Cout, H, W = 2, 4, 4, 8, 8, 8
    Cin = Cx + Cs

    key = jax.random.PRNGKey(0)
    ks = jax.random.split(key, 12)

    # Conv weights stored HWIO (PyTorch OIHW weight == jnp.transpose(w, (3, 2, 0, 1)));
    # ConvTranspose2d weight stored in PyTorch layout (Cin, Cout, 2, 2).
    params = {
        "w_up": jax.random.normal(ks[0], (Cin, Cout, 2, 2), jnp.float32) * 0.3,
        "b_up": jax.random.normal(ks[1], (Cout,), jnp.float32) * 0.1,
    }
    for idx, i in enumerate((1, 2, 3, 4)):
        params[f"w{i}"] = jax.random.normal(ks[2 + 2 * idx], (3, 3, Cout, Cout),
                                            jnp.float32) * 0.2
        params[f"b{i}"] = jax.random.normal(ks[3 + 2 * idx], (Cout,),
                                            jnp.float32) * 0.1
        params[f"g{i}"] = jnp.ones((Cout,), jnp.float32)      # BatchNorm2d weight default
        params[f"beta{i}"] = jnp.zeros((Cout,), jnp.float32)  # BatchNorm2d bias default

    x = jax.random.normal(ks[10], (N, Cx, H, W), jnp.float32)   # NCHW, like PyTorch
    skip = jax.random.normal(ks[11], (N, Cs, H, W), jnp.float32)

    fwd = jax.jit(u_decoder_forward)
    out = jax.block_until_ready(fwd(x, skip, params))

    assert out.shape == (N, Cout, 2 * H, 2 * W), out.shape

    ref = reference_forward(x, skip, params)
    max_err = float(jnp.max(jnp.abs(out - ref)))
    if not max_err < 2e-3:
        raise RuntimeError(f"Pallas output mismatch vs reference: max_err={max_err}")

    print("KERNEL_OK")
</pallas_src>

<mosaic_0001>
module attributes {stable_mosaic.version = 11 : i64} {
  func.func @u_decoder_kernel(%arg0: memref<16x64xf32, #tpu.memory_space<vmem>>, %arg1: memref<32x16xf32, #tpu.memory_space<vmem>>, %arg2: memref<32x16xf32, #tpu.memory_space<vmem>>, %arg3: memref<64x128xf32, #tpu.memory_space<vmem>>, %arg4: memref<64x128xf32, #tpu.memory_space<vmem>>, %arg5: memref<1x128xf32, #tpu.memory_space<vmem>>, %arg6: memref<32x32xf32, #tpu.memory_space<vmem>>, %arg7: memref<32x32xf32, #tpu.memory_space<vmem>>, %arg8: memref<4x3x128x128xf32, #tpu.memory_space<vmem>>, %arg9: memref<4x128xf32, #tpu.memory_space<vmem>>, %arg10: memref<4x128xf32, #tpu.memory_space<vmem>>, %arg11: memref<128x128xf32, #tpu.memory_space<vmem>>, %arg12: memref<32x128xf32, #tpu.memory_space<vmem>>) attributes {dimension_semantics = [], scalar_prefetch = 0 : i64, scratch_operands = 0 : i64, tpu.core_type = #tpu.core_type<tc>} {
    %c0 = arith.constant 0 : index
    %c0_0 = arith.constant 0 : index
    %0 = vector.load %arg0[%c0, %c0_0] : memref<16x64xf32, #tpu.memory_space<vmem>>, vector<16x64xf32>
    %c0_1 = arith.constant 0 : index
    %c0_2 = arith.constant 0 : index
    %1 = vector.load %arg1[%c0_1, %c0_2] : memref<32x16xf32, #tpu.memory_space<vmem>>, vector<32x16xf32>
    %c0_3 = arith.constant 0 : index
    %c0_4 = arith.constant 0 : index
    %2 = vector.load %arg3[%c0_3, %c0_4] : memref<64x128xf32, #tpu.memory_space<vmem>>, vector<64x128xf32>
    %cst = arith.constant dense<0.000000e+00> : vector<16x128xf32>
    %3 = tpu.matmul %0, %2, %cst {dimension_numbers = #tpu.dot_dimension_numbers<[1], [0], [0], [1], [0, 0, 1, 1], [], []>} : vector<16x64xf32>, vector<64x128xf32>, vector<16x128xf32> -> vector<16x128xf32>
    %cst_5 = arith.constant dense<0.000000e+00> : vector<32x128xf32>
    %4 = tpu.matmul %1, %3, %cst_5 {dimension_numbers = #tpu.dot_dimension_numbers<[1], [0], [0], [1], [0, 0, 1, 1], [], []>} : vector<32x16xf32>, vector<16x128xf32>, vector<32x128xf32> -> vector<32x128xf32>
    %c0_6 = arith.constant 0 : index
    %c0_7 = arith.constant 0 : index
    %5 = vector.load %arg2[%c0_6, %c0_7] : memref<32x16xf32, #tpu.memory_space<vmem>>, vector<32x16xf32>
    %c0_8 = arith.constant 0 : index
    %c0_9 = arith.constant 0 : index
    %6 = vector.load %arg4[%c0_8, %c0_9] : memref<64x128xf32, #tpu.memory_space<vmem>>, vector<64x128xf32>
    %cst_10 = arith.constant dense<0.000000e+00> : vector<16x128xf32>
    %7 = tpu.matmul %0, %6, %cst_10 {dimension_numbers = #tpu.dot_dimension_numbers<[1], [0], [0], [1], [0, 0, 1, 1], [], []>} : vector<16x64xf32>, vector<64x128xf32>, vector<16x128xf32> -> vector<16x128xf32>
    %cst_11 = arith.constant dense<0.000000e+00> : vector<32x128xf32>
    %8 = tpu.matmul %5, %7, %cst_11 {dimension_numbers = #tpu.dot_dimension_numbers<[1], [0], [0], [1], [0, 0, 1, 1], [], []>} : vector<32x16xf32>, vector<16x128xf32>, vector<32x128xf32> -> vector<32x128xf32>
    %9 = arith.addf %4, %8 : vector<32x128xf32>
    %c0_12 = arith.constant 0 : index
    %c0_13 = arith.constant 0 : index
    %10 = vector.load %arg5[%c0_12, %c0_13] : memref<1x128xf32, #tpu.memory_space<vmem>>, vector<1x128xf32>
    %11 = vector.broadcast %10 : vector<1x128xf32> to vector<32x128xf32>
    %12 = arith.addf %9, %11 : vector<32x128xf32>
    %c0_14 = arith.constant 0 : index
    %c0_15 = arith.constant 0 : index
    %13 = vector.load %arg6[%c0_14, %c0_15] : memref<32x32xf32, #tpu.memory_space<vmem>>, vector<32x32xf32>
    %c0_16 = arith.constant 0 : index
    %c0_17 = arith.constant 0 : index
    %14 = vector.load %arg7[%c0_16, %c0_17] : memref<32x32xf32, #tpu.memory_space<vmem>>, vector<32x32xf32>
    %c0_18 = arith.constant 0 : index
    %c0_19 = arith.constant 0 : index
    %15 = vector.load %arg11[%c0_18, %c0_19] : memref<128x128xf32, #tpu.memory_space<vmem>>, vector<128x128xf32>
    %c0_20 = arith.constant 0 : index
    %c0_21 = arith.constant 0 : index
    %16 = vector.load %arg9[%c0_20, %c0_21] : memref<4x128xf32, #tpu.memory_space<vmem>>, vector<4x128xf32>
    %c0_22 = arith.constant 0 : index
    %c0_23 = arith.constant 0 : index
    %17 = vector.load %arg10[%c0_22, %c0_23] : memref<4x128xf32, #tpu.memory_space<vmem>>, vector<4x128xf32>
    %cst_24 = arith.constant dense<0.000000e+00> : vector<32x128xf32>
    %18 = tpu.matmul %13, %12, %cst_24 {dimension_numbers = #tpu.dot_dimension_numbers<[1], [0], [0], [1], [0, 0, 1, 1], [], []>} : vector<32x32xf32>, vector<32x128xf32>, vector<32x128xf32> -> vector<32x128xf32>
    %cst_25 = arith.constant dense<0.000000e+00> : vector<32x128xf32>
    %19 = tpu.matmul %14, %12, %cst_25 {dimension_numbers = #tpu.dot_dimension_numbers<[1], [0], [0], [1], [0, 0, 1, 1], [], []>} : vector<32x32xf32>, vector<32x128xf32>, vector<32x128xf32> -> vector<32x128xf32>
    %c0_26 = arith.constant 0 : index
    %c0_27 = arith.constant 0 : index
    %c0_28 = arith.constant 0 : index
    %c0_29 = arith.constant 0 : index
    %20 = vector.load %arg8[%c0_26, %c0_27, %c0_28, %c0_29] : memref<4x3x128x128xf32, #tpu.memory_space<vmem>>, vector<1x1x128x128xf32>
    %21 = vector.shape_cast %20 : vector<1x1x128x128xf32> to vector<128x128xf32>
    %cst_30 = arith.constant dense<0.000000e+00> : vector<32x128xf32>
    %22 = tpu.matmul %18, %21, %cst_30 {dimension_numbers = #tpu.dot_dimension_numbers<[1], [0], [0], [1], [0, 0, 1, 1], [], []>} : vector<32x128xf32>, vector<128x128xf32>, vector<32x128xf32> -> vector<32x128xf32>
    %c0_31 = arith.constant 0 : index
    %c1 = arith.constant 1 : index
    %c0_32 = arith.constant 0 : index
    %c0_33 = arith.constant 0 : index
    %23 = vector.load %arg8[%c0_31, %c1, %c0_32, %c0_33] : memref<4x3x128x128xf32, #tpu.memory_space<vmem>>, vector<1x1x128x128xf32>
    %24 = vector.shape_cast %23 : vector<1x1x128x128xf32> to vector<128x128xf32>
    %cst_34 = arith.constant dense<0.000000e+00> : vector<32x128xf32>
    %25 = tpu.matmul %12, %24, %cst_34 {dimension_numbers = #tpu.dot_dimension_numbers<[1], [0], [0], [1], [0, 0, 1, 1], [], []>} : vector<32x128xf32>, vector<128x128xf32>, vector<32x128xf32> -> vector<32x128xf32>
    %26 = arith.addf %22, %25 : vector<32x128xf32>
    %c0_35 = arith.constant 0 : index
    %c2 = arith.constant 2 : index
    %c0_36 = arith.constant 0 : index
    %c0_37 = arith.constant 0 : index
    %27 = vector.load %arg8[%c0_35, %c2, %c0_36, %c0_37] : memref<4x3x128x128xf32, #tpu.memory_space<vmem>>, vector<1x1x128x128xf32>
    %28 = vector.shape_cast %27 : vector<1x1x128x128xf32> to vector<128x128xf32>
    %cst_38 = arith.constant dense<0.000000e+00> : vector<32x128xf32>
    %29 = tpu.matmul %19, %28, %cst_38 {dimension_numbers = #tpu.dot_dimension_numbers<[1], [0], [0], [1], [0, 0, 1, 1], [], []>} : vector<32x128xf32>, vector<128x128xf32>, vector<32x128xf32> -> vector<32x128xf32>
    %30 = arith.addf %26, %29 : vector<32x128xf32>
    %cst_39 = arith.constant dense<0.000000e+00> : vector<32x128xf32>
    %31 = tpu.matmul %30, %15, %cst_39 {dimension_numbers = #tpu.dot_dimension_numbers<[1], [0], [0], [1], [0, 0, 1, 1], [], []>} : vector<32x128xf32>, vector<128x128xf32>, vector<32x128xf32> -> vector<32x128xf32>
    %cst_40 = arith.constant dense<0.000000e+00> : vector<128xf32>
    %32 = vector.multi_reduction <add>, %31, %cst_40 [0] : vector<32x128xf32> to vector<128xf32>
    %33 = vector.shape_cast %32 : vector<128xf32> to vector<1x128xf32>
    %34 = arith.mulf %30, %30 : vector<32x128xf32>
    %cst_41 = arith.constant dense<0.000000e+00> : vector<32x128xf32>
    %35 = tpu.matmul %34, %15, %cst_41 {dimension_numbers = #tpu.dot_dimension_numbers<[1], [0], [0], [1], [0, 0, 1, 1], [], []>} : vector<32x128xf32>, vector<128x128xf32>, vector<32x128xf32> -> vector<32x128xf32>
    %cst_42 = arith.constant dense<0.000000e+00> : vector<128xf32>
    %36 = vector.multi_reduction <add>, %35, %cst_42 [0] : vector<32x128xf32> to vector<128xf32>
    %37 = vector.shape_cast %36 : vector<128xf32> to vector<1x128xf32>
    %38 = arith.mulf %33, %33 : vector<1x128xf32>
    %39 = arith.subf %37, %38 : vector<1x128xf32>
    %40 = vector.extract_strided_slice %16 {offsets = [0, 0], sizes = [1, 128], strides = [1, 1]} : vector<4x128xf32> to vector<1x128xf32>
    %cst_43 = arith.constant 9.99999974E-6 : f32
    %41 = vector.broadcast %cst_43 : f32 to vector<1x128xf32>
    %42 = arith.addf %39, %41 : vector<1x128xf32>
    %43 = math.rsqrt %42 : vector<1x128xf32>
    %44 = arith.mulf %40, %43 : vector<1x128xf32>
    %45 = vector.extract_strided_slice %17 {offsets = [0, 0], sizes = [1, 128], strides = [1, 1]} : vector<4x128xf32> to vector<1x128xf32>
    %46 = arith.mulf %33, %44 : vector<1x128xf32>
    %47 = arith.subf %45, %46 : vector<1x128xf32>
    %48 = vector.broadcast %44 : vector<1x128xf32> to vector<32x128xf32>
    %49 = arith.mulf %30, %48 : vector<32x128xf32>
    %50 = vector.broadcast %47 : vector<1x128xf32> to vector<32x128xf32>
    %51 = arith.addf %49, %50 : vector<32x128xf32>
    %cst_44 = arith.constant 0.707106769 : f32
    %52 = vector.broadcast %cst_44 : f32 to vector<32x128xf32>
    %53 = arith.mulf %51, %52 : vector<32x128xf32>
    %cst_45 = arith.constant -4.000000e+00 : f32
    %cst_46 = arith.constant 4.000000e+00 : f32
    %54 = vector.broadcast %cst_45 : f32 to vector<32x128xf32>
    %55 = arith.maximumf %54, %53 : vector<32x128xf32>
    %56 = vector.broadcast %cst_46 : f32 to vector<32x128xf32>
    %57 = arith.minimumf %56, %55 : vector<32x128xf32>
    %58 = arith.mulf %57, %57 : vector<32x128xf32>
    %cst_47 = arith.constant -2.72614237E-10 : f32
    %59 = vector.broadcast %cst_47 : f32 to vector<32x128xf32>
    %60 = arith.mulf %59, %58 : vector<32x128xf32>
    %cst_48 = arith.constant 2.77068146E-8 : f32
    %61 = vector.broadcast %cst_48 : f32 to vector<32x128xf32>
    %62 = arith.addf %60, %61 : vector<32x128xf32>
    %63 = arith.mulf %62, %58 : vector<32x128xf32>
    %cst_49 = arith.constant -2.10102394E-6 : f32
    %64 = vector.broadcast %cst_49 : f32 to vector<32x128xf32>
    %65 = arith.addf %63, %64 : vector<32x128xf32>
    %66 = arith.mulf %65, %58 : vector<32x128xf32>
    %cst_50 = arith.constant -5.69250624E-5 : f32
    %67 = vector.broadcast %cst_50 : f32 to vector<32x128xf32>
    %68 = arith.addf %66, %67 : vector<32x128xf32>
    %69 = arith.mulf %68, %58 : vector<32x128xf32>
    %cst_51 = arith.constant -7.34990637E-4 : f32
    %70 = vector.broadcast %cst_51 : f32 to vector<32x128xf32>
    %71 = arith.addf %69, %70 : vector<32x128xf32>
    %72 = arith.mulf %71, %58 : vector<32x128xf32>
    %cst_52 = arith.constant -2.954600e-03 : f32
    %73 = vector.broadcast %cst_52 : f32 to vector<32x128xf32>
    %74 = arith.addf %72, %73 : vector<32x128xf32>
    %75 = arith.mulf %74, %58 : vector<32x128xf32>
    %cst_53 = arith.constant -0.0160960332 : f32
    %76 = vector.broadcast %cst_53 : f32 to vector<32x128xf32>
    %77 = arith.addf %75, %76 : vector<32x128xf32>
    %78 = arith.mulf %77, %57 : vector<32x128xf32>
    %cst_54 = arith.constant -1.45660715E-5 : f32
    %79 = vector.broadcast %cst_54 : f32 to vector<32x128xf32>
    %80 = arith.mulf %79, %58 : vector<32x128xf32>
    %cst_55 = arith.constant -2.13374049E-4 : f32
    %81 = vector.broadcast %cst_55 : f32 to vector<32x128xf32>
    %82 = arith.addf %80, %81 : vector<32x128xf32>
    %83 = arith.mulf %82, %58 : vector<32x128xf32>
    %cst_56 = arith.constant -0.00168282702 : f32
    %84 = vector.broadcast %cst_56 : f32 to vector<32x128xf32>
    %85 = arith.addf %83, %84 : vector<32x128xf32>
    %86 = arith.mulf %85, %58 : vector<32x128xf32>
    %cst_57 = arith.constant -0.00737332925 : f32
    %87 = vector.broadcast %cst_57 : f32 to vector<32x128xf32>
    %88 = arith.addf %86, %87 : vector<32x128xf32>
    %89 = arith.mulf %88, %58 : vector<32x128xf32>
    %cst_58 = arith.constant -0.0142647391 : f32
    %90 = vector.broadcast %cst_58 : f32 to vector<32x128xf32>
    %91 = arith.addf %89, %90 : vector<32x128xf32>
    %cst_59 = arith.constant 5.000000e-01 : f32
    %92 = vector.broadcast %cst_59 : f32 to vector<32x128xf32>
    %93 = arith.mulf %92, %51 : vector<32x128xf32>
    %94 = arith.divf %78, %91 : vector<32x128xf32>
    %cst_60 = arith.constant 1.000000e+00 : f32
    %95 = vector.broadcast %cst_60 : f32 to vector<32x128xf32>
    %96 = arith.addf %95, %94 : vector<32x128xf32>
    %97 = arith.mulf %93, %96 : vector<32x128xf32>
    %cst_61 = arith.constant dense<0.000000e+00> : vector<32x128xf32>
    %98 = tpu.matmul %13, %97, %cst_61 {dimension_numbers = #tpu.dot_dimension_numbers<[1], [0], [0], [1], [0, 0, 1, 1], [], []>} : vector<32x32xf32>, vector<32x128xf32>, vector<32x128xf32> -> vector<32x128xf32>
    %cst_62 = arith.constant dense<0.000000e+00> : vector<32x128xf32>
    %99 = tpu.matmul %14, %97, %cst_62 {dimension_numbers = #tpu.dot_dimension_numbers<[1], [0], [0], [1], [0, 0, 1, 1], [], []>} : vector<32x32xf32>, vector<32x128xf32>, vector<32x128xf32> -> vector<32x128xf32>
    %c1_63 = arith.constant 1 : index
    %c0_64 = arith.constant 0 : index
    %c0_65 = arith.constant 0 : index
    %c0_66 = arith.constant 0 : index
    %100 = vector.load %arg8[%c1_63, %c0_64, %c0_65, %c0_66] : memref<4x3x128x128xf32, #tpu.memory_space<vmem>>, vector<1x1x128x128xf32>
    %101 = vector.shape_cast %100 : vector<1x1x128x128xf32> to vector<128x128xf32>
    %cst_67 = arith.constant dense<0.000000e+00> : vector<32x128xf32>
    %102 = tpu.matmul %98, %101, %cst_67 {dimension_numbers = #tpu.dot_dimension_numbers<[1], [0], [0], [1], [0, 0, 1, 1], [], []>} : vector<32x128xf32>, vector<128x128xf32>, vector<32x128xf32> -> vector<32x128xf32>
    %c1_68 = arith.constant 1 : index
    %c1_69 = arith.constant 1 : index
    %c0_70 = arith.constant 0 : index
    %c0_71 = arith.constant 0 : index
    %103 = vector.load %arg8[%c1_68, %c1_69, %c0_70, %c0_71] : memref<4x3x128x128xf32, #tpu.memory_space<vmem>>, vector<1x1x128x128xf32>
    %104 = vector.shape_cast %103 : vector<1x1x128x128xf32> to vector<128x128xf32>
    %cst_72 = arith.constant dense<0.000000e+00> : vector<32x128xf32>
    %105 = tpu.matmul %97, %104, %cst_72 {dimension_numbers = #tpu.dot_dimension_numbers<[1], [0], [0], [1], [0, 0, 1, 1], [], []>} : vector<32x128xf32>, vector<128x128xf32>, vector<32x128xf32> -> vector<32x128xf32>
    %106 = arith.addf %102, %105 : vector<32x128xf32>
    %c1_73 = arith.constant 1 : index
    %c2_74 = arith.constant 2 : index
    %c0_75 = arith.constant 0 : index
    %c0_76 = arith.constant 0 : index
    %107 = vector.load %arg8[%c1_73, %c2_74, %c0_75, %c0_76] : memref<4x3x128x128xf32, #tpu.memory_space<vmem>>, vector<1x1x128x128xf32>
    %108 = vector.shape_cast %107 : vector<1x1x128x128xf32> to vector<128x128xf32>
    %cst_77 = arith.constant dense<0.000000e+00> : vector<32x128xf32>
    %109 = tpu.matmul %99, %108, %cst_77 {dimension_numbers = #tpu.dot_dimension_numbers<[1], [0], [0], [1], [0, 0, 1, 1], [], []>} : vector<32x128xf32>, vector<128x128xf32>, vector<32x128xf32> -> vector<32x128xf32>
    %110 = arith.addf %106, %109 : vector<32x128xf32>
    %cst_78 = arith.constant dense<0.000000e+00> : vector<32x128xf32>
    %111 = tpu.matmul %110, %15, %cst_78 {dimension_numbers = #tpu.dot_dimension_numbers<[1], [0], [0], [1], [0, 0, 1, 1], [], []>} : vector<32x128xf32>, vector<128x128xf32>, vector<32x128xf32> -> vector<32x128xf32>
    %cst_79 = arith.constant dense<0.000000e+00> : vector<128xf32>
    %112 = vector.multi_reduction <add>, %111, %cst_79 [0] : vector<32x128xf32> to vector<128xf32>
    %113 = vector.shape_cast %112 : vector<128xf32> to vector<1x128xf32>
    %114 = arith.mulf %110, %110 : vector<32x128xf32>
    %cst_80 = arith.constant dense<0.000000e+00> : vector<32x128xf32>
    %115 = tpu.matmul %114, %15, %cst_80 {dimension_numbers = #tpu.dot_dimension_numbers<[1], [0], [0], [1], [0, 0, 1, 1], [], []>} : vector<32x128xf32>, vector<128x128xf32>, vector<32x128xf32> -> vector<32x128xf32>
    %cst_81 = arith.constant dense<0.000000e+00> : vector<128xf32>
    %116 = vector.multi_reduction <add>, %115, %cst_81 [0] : vector<32x128xf32> to vector<128xf32>
    %117 = vector.shape_cast %116 : vector<128xf32> to vector<1x128xf32>
    %118 = arith.mulf %113, %113 : vector<1x128xf32>
    %119 = arith.subf %117, %118 : vector<1x128xf32>
    %120 = vector.extract_strided_slice %16 {offsets = [1, 0], sizes = [1, 128], strides = [1, 1]} : vector<4x128xf32> to vector<1x128xf32>
    %cst_82 = arith.constant 9.99999974E-6 : f32
    %121 = vector.broadcast %cst_82 : f32 to vector<1x128xf32>
    %122 = arith.addf %119, %121 : vector<1x128xf32>
    %123 = math.rsqrt %122 : vector<1x128xf32>
    %124 = arith.mulf %120, %123 : vector<1x128xf32>
    %125 = vector.extract_strided_slice %17 {offsets = [1, 0], sizes = [1, 128], strides = [1, 1]} : vector<4x128xf32> to vector<1x128xf32>
    %126 = arith.mulf %113, %124 : vector<1x128xf32>
    %127 = arith.subf %125, %126 : vector<1x128xf32>
    %128 = vector.broadcast %124 : vector<1x128xf32> to vector<32x128xf32>
    %129 = arith.mulf %110, %128 : vector<32x128xf32>
    %130 = vector.broadcast %127 : vector<1x128xf32> to vector<32x128xf32>
    %131 = arith.addf %129, %130 : vector<32x128xf32>
    %cst_83 = arith.constant 0.707106769 : f32
    %132 = vector.broadcast %cst_83 : f32 to vector<32x128xf32>
    %133 = arith.mulf %131, %132 : vector<32x128xf32>
    %cst_84 = arith.constant -4.000000e+00 : f32
    %cst_85 = arith.constant 4.000000e+00 : f32
    %134 = vector.broadcast %cst_84 : f32 to vector<32x128xf32>
    %135 = arith.maximumf %134, %133 : vector<32x128xf32>
    %136 = vector.broadcast %cst_85 : f32 to vector<32x128xf32>
    %137 = arith.minimumf %136, %135 : vector<32x128xf32>
    %138 = arith.mulf %137, %137 : vector<32x128xf32>
    %cst_86 = arith.constant -2.72614237E-10 : f32
    %139 = vector.broadcast %cst_86 : f32 to vector<32x128xf32>
    %140 = arith.mulf %139, %138 : vector<32x128xf32>
    %cst_87 = arith.constant 2.77068146E-8 : f32
    %141 = vector.broadcast %cst_87 : f32 to vector<32x128xf32>
    %142 = arith.addf %140, %141 : vector<32x128xf32>
    %143 = arith.mulf %142, %138 : vector<32x128xf32>
    %cst_88 = arith.constant -2.10102394E-6 : f32
    %144 = vector.broadcast %cst_88 : f32 to vector<32x128xf32>
    %145 = arith.addf %143, %144 : vector<32x128xf32>
    %146 = arith.mulf %145, %138 : vector<32x128xf32>
    %cst_89 = arith.constant -5.69250624E-5 : f32
    %147 = vector.broadcast %cst_89 : f32 to vector<32x128xf32>
    %148 = arith.addf %146, %147 : vector<32x128xf32>
    %149 = arith.mulf %148, %138 : vector<32x128xf32>
    %cst_90 = arith.constant -7.34990637E-4 : f32
    %150 = vector.broadcast %cst_90 : f32 to vector<32x128xf32>
    %151 = arith.addf %149, %150 : vector<32x128xf32>
    %152 = arith.mulf %151, %138 : vector<32x128xf32>
    %cst_91 = arith.constant -2.954600e-03 : f32
    %153 = vector.broadcast %cst_91 : f32 to vector<32x128xf32>
    %154 = arith.addf %152, %153 : vector<32x128xf32>
    %155 = arith.mulf %154, %138 : vector<32x128xf32>
    %cst_92 = arith.constant -0.0160960332 : f32
    %156 = vector.broadcast %cst_92 : f32 to vector<32x128xf32>
    %157 = arith.addf %155, %156 : vector<32x128xf32>
    %158 = arith.mulf %157, %137 : vector<32x128xf32>
    %cst_93 = arith.constant -1.45660715E-5 : f32
    %159 = vector.broadcast %cst_93 : f32 to vector<32x128xf32>
    %160 = arith.mulf %159, %138 : vector<32x128xf32>
    %cst_94 = arith.constant -2.13374049E-4 : f32
    %161 = vector.broadcast %cst_94 : f32 to vector<32x128xf32>
    %162 = arith.addf %160, %161 : vector<32x128xf32>
    %163 = arith.mulf %162, %138 : vector<32x128xf32>
    %cst_95 = arith.constant -0.00168282702 : f32
    %164 = vector.broadcast %cst_95 : f32 to vector<32x128xf32>
    %165 = arith.addf %163, %164 : vector<32x128xf32>
    %166 = arith.mulf %165, %138 : vector<32x128xf32>
    %cst_96 = arith.constant -0.00737332925 : f32
    %167 = vector.broadcast %cst_96 : f32 to vector<32x128xf32>
    %168 = arith.addf %166, %167 : vector<32x128xf32>
    %169 = arith.mulf %168, %138 : vector<32x128xf32>
    %cst_97 = arith.constant -0.0142647391 : f32
    %170 = vector.broadcast %cst_97 : f32 to vector<32x128xf32>
    %171 = arith.addf %169, %170 : vector<32x128xf32>
    %cst_98 = arith.constant 5.000000e-01 : f32
    %172 = vector.broadcast %cst_98 : f32 to vector<32x128xf32>
    %173 = arith.mulf %172, %131 : vector<32x128xf32>
    %174 = arith.divf %158, %171 : vector<32x128xf32>
    %cst_99 = arith.constant 1.000000e+00 : f32
    %175 = vector.broadcast %cst_99 : f32 to vector<32x128xf32>
    %176 = arith.addf %175, %174 : vector<32x128xf32>
    %177 = arith.mulf %173, %176 : vector<32x128xf32>
    %cst_100 = arith.constant dense<0.000000e+00> : vector<32x128xf32>
    %178 = tpu.matmul %13, %177, %cst_100 {dimension_numbers = #tpu.dot_dimension_numbers<[1], [0], [0], [1], [0, 0, 1, 1], [], []>} : vector<32x32xf32>, vector<32x128xf32>, vector<32x128xf32> -> vector<32x128xf32>
    %cst_101 = arith.constant dense<0.000000e+00> : vector<32x128xf32>
    %179 = tpu.matmul %14, %177, %cst_101 {dimension_numbers = #tpu.dot_dimension_numbers<[1], [0], [0], [1], [0, 0, 1, 1], [], []>} : vector<32x32xf32>, vector<32x128xf32>, vector<32x128xf32> -> vector<32x128xf32>
    %c2_102 = arith.constant 2 : index
    %c0_103 = arith.constant 0 : index
    %c0_104 = arith.constant 0 : index
    %c0_105 = arith.constant 0 : index
    %180 = vector.load %arg8[%c2_102, %c0_103, %c0_104, %c0_105] : memref<4x3x128x128xf32, #tpu.memory_space<vmem>>, vector<1x1x128x128xf32>
    %181 = vector.shape_cast %180 : vector<1x1x128x128xf32> to vector<128x128xf32>
    %cst_106 = arith.constant dense<0.000000e+00> : vector<32x128xf32>
    %182 = tpu.matmul %178, %181, %cst_106 {dimension_numbers = #tpu.dot_dimension_numbers<[1], [0], [0], [1], [0, 0, 1, 1], [], []>} : vector<32x128xf32>, vector<128x128xf32>, vector<32x128xf32> -> vector<32x128xf32>
    %c2_107 = arith.constant 2 : index
    %c1_108 = arith.constant 1 : index
    %c0_109 = arith.constant 0 : index
    %c0_110 = arith.constant 0 : index
    %183 = vector.load %arg8[%c2_107, %c1_108, %c0_109, %c0_110] : memref<4x3x128x128xf32, #tpu.memory_space<vmem>>, vector<1x1x128x128xf32>
    %184 = vector.shape_cast %183 : vector<1x1x128x128xf32> to vector<128x128xf32>
    %cst_111 = arith.constant dense<0.000000e+00> : vector<32x128xf32>
    %185 = tpu.matmul %177, %184, %cst_111 {dimension_numbers = #tpu.dot_dimension_numbers<[1], [0], [0], [1], [0, 0, 1, 1], [], []>} : vector<32x128xf32>, vector<128x128xf32>, vector<32x128xf32> -> vector<32x128xf32>
    %186 = arith.addf %182, %185 : vector<32x128xf32>
    %c2_112 = arith.constant 2 : index
    %c2_113 = arith.constant 2 : index
    %c0_114 = arith.constant 0 : index
    %c0_115 = arith.constant 0 : index
    %187 = vector.load %arg8[%c2_112, %c2_113, %c0_114, %c0_115] : memref<4x3x128x128xf32, #tpu.memory_space<vmem>>, vector<1x1x128x128xf32>
    %188 = vector.shape_cast %187 : vector<1x1x128x128xf32> to vector<128x128xf32>
    %cst_116 = arith.constant dense<0.000000e+00> : vector<32x128xf32>
    %189 = tpu.matmul %179, %188, %cst_116 {dimension_numbers = #tpu.dot_dimension_numbers<[1], [0], [0], [1], [0, 0, 1, 1], [], []>} : vector<32x128xf32>, vector<128x128xf32>, vector<32x128xf32> -> vector<32x128xf32>
    %190 = arith.addf %186, %189 : vector<32x128xf32>
    %cst_117 = arith.constant dense<0.000000e+00> : vector<32x128xf32>
    %191 = tpu.matmul %190, %15, %cst_117 {dimension_numbers = #tpu.dot_dimension_numbers<[1], [0], [0], [1], [0, 0, 1, 1], [], []>} : vector<32x128xf32>, vector<128x128xf32>, vector<32x128xf32> -> vector<32x128xf32>
    %cst_118 = arith.constant dense<0.000000e+00> : vector<128xf32>
    %192 = vector.multi_reduction <add>, %191, %cst_118 [0] : vector<32x128xf32> to vector<128xf32>
    %193 = vector.shape_cast %192 : vector<128xf32> to vector<1x128xf32>
    %194 = arith.mulf %190, %190 : vector<32x128xf32>
    %cst_119 = arith.constant dense<0.000000e+00> : vector<32x128xf32>
    %195 = tpu.matmul %194, %15, %cst_119 {dimension_numbers = #tpu.dot_dimension_numbers<[1], [0], [0], [1], [0, 0, 1, 1], [], []>} : vector<32x128xf32>, vector<128x128xf32>, vector<32x128xf32> -> vector<32x128xf32>
    %cst_120 = arith.constant dense<0.000000e+00> : vector<128xf32>
    %196 = vector.multi_reduction <add>, %195, %cst_120 [0] : vector<32x128xf32> to vector<128xf32>
    %197 = vector.shape_cast %196 : vector<128xf32> to vector<1x128xf32>
    %198 = arith.mulf %193, %193 : vector<1x128xf32>
    %199 = arith.subf %197, %198 : vector<1x128xf32>
    %200 = vector.extract_strided_slice %16 {offsets = [2, 0], sizes = [1, 128], strides = [1, 1]} : vector<4x128xf32> to vector<1x128xf32>
    %cst_121 = arith.constant 9.99999974E-6 : f32
    %201 = vector.broadcast %cst_121 : f32 to vector<1x128xf32>
    %202 = arith.addf %199, %201 : vector<1x128xf32>
    %203 = math.rsqrt %202 : vector<1x128xf32>
    %204 = arith.mulf %200, %203 : vector<1x128xf32>
    %205 = vector.extract_strided_slice %17 {offsets = [2, 0], sizes = [1, 128], strides = [1, 1]} : vector<4x128xf32> to vector<1x128xf32>
    %206 = arith.mulf %193, %204 : vector<1x128xf32>
    %207 = arith.subf %205, %206 : vector<1x128xf32>
    %208 = vector.broadcast %204 : vector<1x128xf32> to vector<32x128xf32>
    %209 = arith.mulf %190, %208 : vector<32x128xf32>
    %210 = vector.broadcast %207 : vector<1x128xf32> to vector<32x128xf32>
    %211 = arith.addf %209, %210 : vector<32x128xf32>
    %cst_122 = arith.constant 0.707106769 : f32
    %212 = vector.broadcast %cst_122 : f32 to vector<32x128xf32>
    %213 = arith.mulf %211, %212 : vector<32x128xf32>
    %cst_123 = arith.constant -4.000000e+00 : f32
    %cst_124 = arith.constant 4.000000e+00 : f32
    %214 = vector.broadcast %cst_123 : f32 to vector<32x128xf32>
    %215 = arith.maximumf %214, %213 : vector<32x128xf32>
    %216 = vector.broadcast %cst_124 : f32 to vector<32x128xf32>
    %217 = arith.minimumf %216, %215 : vector<32x128xf32>
    %218 = arith.mulf %217, %217 : vector<32x128xf32>
    %cst_125 = arith.constant -2.72614237E-10 : f32
    %219 = vector.broadcast %cst_125 : f32 to vector<32x128xf32>
    %220 = arith.mulf %219, %218 : vector<32x128xf32>
    %cst_126 = arith.constant 2.77068146E-8 : f32
    %221 = vector.broadcast %cst_126 : f32 to vector<32x128xf32>
    %222 = arith.addf %220, %221 : vector<32x128xf32>
    %223 = arith.mulf %222, %218 : vector<32x128xf32>
    %cst_127 = arith.constant -2.10102394E-6 : f32
    %224 = vector.broadcast %cst_127 : f32 to vector<32x128xf32>
    %225 = arith.addf %223, %224 : vector<32x128xf32>
    %226 = arith.mulf %225, %218 : vector<32x128xf32>
    %cst_128 = arith.constant -5.69250624E-5 : f32
    %227 = vector.broadcast %cst_128 : f32 to vector<32x128xf32>
    %228 = arith.addf %226, %227 : vector<32x128xf32>
    %229 = arith.mulf %228, %218 : vector<32x128xf32>
    %cst_129 = arith.constant -7.34990637E-4 : f32
    %230 = vector.broadcast %cst_129 : f32 to vector<32x128xf32>
    %231 = arith.addf %229, %230 : vector<32x128xf32>
    %232 = arith.mulf %231, %218 : vector<32x128xf32>
    %cst_130 = arith.constant -2.954600e-03 : f32
    %233 = vector.broadcast %cst_130 : f32 to vector<32x128xf32>
    %234 = arith.addf %232, %233 : vector<32x128xf32>
    %235 = arith.mulf %234, %218 : vector<32x128xf32>
    %cst_131 = arith.constant -0.0160960332 : f32
    %236 = vector.broadcast %cst_131 : f32 to vector<32x128xf32>
    %237 = arith.addf %235, %236 : vector<32x128xf32>
    %238 = arith.mulf %237, %217 : vector<32x128xf32>
    %cst_132 = arith.constant -1.45660715E-5 : f32
    %239 = vector.broadcast %cst_132 : f32 to vector<32x128xf32>
    %240 = arith.mulf %239, %218 : vector<32x128xf32>
    %cst_133 = arith.constant -2.13374049E-4 : f32
    %241 = vector.broadcast %cst_133 : f32 to vector<32x128xf32>
    %242 = arith.addf %240, %241 : vector<32x128xf32>
    %243 = arith.mulf %242, %218 : vector<32x128xf32>
    %cst_134 = arith.constant -0.00168282702 : f32
    %244 = vector.broadcast %cst_134 : f32 to vector<32x128xf32>
    %245 = arith.addf %243, %244 : vector<32x128xf32>
    %246 = arith.mulf %245, %218 : vector<32x128xf32>
    %cst_135 = arith.constant -0.00737332925 : f32
    %247 = vector.broadcast %cst_135 : f32 to vector<32x128xf32>
    %248 = arith.addf %246, %247 : vector<32x128xf32>
    %249 = arith.mulf %248, %218 : vector<32x128xf32>
    %cst_136 = arith.constant -0.0142647391 : f32
    %250 = vector.broadcast %cst_136 : f32 to vector<32x128xf32>
    %251 = arith.addf %249, %250 : vector<32x128xf32>
    %cst_137 = arith.constant 5.000000e-01 : f32
    %252 = vector.broadcast %cst_137 : f32 to vector<32x128xf32>
    %253 = arith.mulf %252, %211 : vector<32x128xf32>
    %254 = arith.divf %238, %251 : vector<32x128xf32>
    %cst_138 = arith.constant 1.000000e+00 : f32
    %255 = vector.broadcast %cst_138 : f32 to vector<32x128xf32>
    %256 = arith.addf %255, %254 : vector<32x128xf32>
    %257 = arith.mulf %253, %256 : vector<32x128xf32>
    %cst_139 = arith.constant dense<0.000000e+00> : vector<32x128xf32>
    %258 = tpu.matmul %13, %257, %cst_139 {dimension_numbers = #tpu.dot_dimension_numbers<[1], [0], [0], [1], [0, 0, 1, 1], [], []>} : vector<32x32xf32>, vector<32x128xf32>, vector<32x128xf32> -> vector<32x128xf32>
    %cst_140 = arith.constant dense<0.000000e+00> : vector<32x128xf32>
    %259 = tpu.matmul %14, %257, %cst_140 {dimension_numbers = #tpu.dot_dimension_numbers<[1], [0], [0], [1], [0, 0, 1, 1], [], []>} : vector<32x32xf32>, vector<32x128xf32>, vector<32x128xf32> -> vector<32x128xf32>
    %c3 = arith.constant 3 : index
    %c0_141 = arith.constant 0 : index
    %c0_142 = arith.constant 0 : index
    %c0_143 = arith.constant 0 : index
    %260 = vector.load %arg8[%c3, %c0_141, %c0_142, %c0_143] : memref<4x3x128x128xf32, #tpu.memory_space<vmem>>, vector<1x1x128x128xf32>
    %261 = vector.shape_cast %260 : vector<1x1x128x128xf32> to vector<128x128xf32>
    %cst_144 = arith.constant dense<0.000000e+00> : vector<32x128xf32>
    %262 = tpu.matmul %258, %261, %cst_144 {dimension_numbers = #tpu.dot_dimension_numbers<[1], [0], [0], [1], [0, 0, 1, 1], [], []>} : vector<32x128xf32>, vector<128x128xf32>, vector<32x128xf32> -> vector<32x128xf32>
    %c3_145 = arith.constant 3 : index
    %c1_146 = arith.constant 1 : index
    %c0_147 = arith.constant 0 : index
    %c0_148 = arith.constant 0 : index
    %263 = vector.load %arg8[%c3_145, %c1_146, %c0_147, %c0_148] : memref<4x3x128x128xf32, #tpu.memory_space<vmem>>, vector<1x1x128x128xf32>
    %264 = vector.shape_cast %263 : vector<1x1x128x128xf32> to vector<128x128xf32>
    %cst_149 = arith.constant dense<0.000000e+00> : vector<32x128xf32>
    %265 = tpu.matmul %257, %264, %cst_149 {dimension_numbers = #tpu.dot_dimension_numbers<[1], [0], [0], [1], [0, 0, 1, 1], [], []>} : vector<32x128xf32>, vector<128x128xf32>, vector<32x128xf32> -> vector<32x128xf32>
    %266 = arith.addf %262, %265 : vector<32x128xf32>
    %c3_150 = arith.constant 3 : index
    %c2_151 = arith.constant 2 : index
    %c0_152 = arith.constant 0 : index
    %c0_153 = arith.constant 0 : index
    %267 = vector.load %arg8[%c3_150, %c2_151, %c0_152, %c0_153] : memref<4x3x128x128xf32, #tpu.memory_space<vmem>>, vector<1x1x128x128xf32>
    %268 = vector.shape_cast %267 : vector<1x1x128x128xf32> to vector<128x128xf32>
    %cst_154 = arith.constant dense<0.000000e+00> : vector<32x128xf32>
    %269 = tpu.matmul %259, %268, %cst_154 {dimension_numbers = #tpu.dot_dimension_numbers<[1], [0], [0], [1], [0, 0, 1, 1], [], []>} : vector<32x128xf32>, vector<128x128xf32>, vector<32x128xf32> -> vector<32x128xf32>
    %270 = arith.addf %266, %269 : vector<32x128xf32>
    %cst_155 = arith.constant dense<0.000000e+00> : vector<32x128xf32>
    %271 = tpu.matmul %270, %15, %cst_155 {dimension_numbers = #tpu.dot_dimension_numbers<[1], [0], [0], [1], [0, 0, 1, 1], [], []>} : vector<32x128xf32>, vector<128x128xf32>, vector<32x128xf32> -> vector<32x128xf32>
    %cst_156 = arith.constant dense<0.000000e+00> : vector<128xf32>
    %272 = vector.multi_reduction <add>, %271, %cst_156 [0] : vector<32x128xf32> to vector<128xf32>
    %273 = vector.shape_cast %272 : vector<128xf32> to vector<1x128xf32>
    %274 = arith.mulf %270, %270 : vector<32x128xf32>
    %cst_157 = arith.constant dense<0.000000e+00> : vector<32x128xf32>
    %275 = tpu.matmul %274, %15, %cst_157 {dimension_numbers = #tpu.dot_dimension_numbers<[1], [0], [0], [1], [0, 0, 1, 1], [], []>} : vector<32x128xf32>, vector<128x128xf32>, vector<32x128xf32> -> vector<32x128xf32>
    %cst_158 = arith.constant dense<0.000000e+00> : vector<128xf32>
    %276 = vector.multi_reduction <add>, %275, %cst_158 [0] : vector<32x128xf32> to vector<128xf32>
    %277 = vector.shape_cast %276 : vector<128xf32> to vector<1x128xf32>
    %278 = arith.mulf %273, %273 : vector<1x128xf32>
    %279 = arith.subf %277, %278 : vector<1x128xf32>
    %280 = vector.extract_strided_slice %16 {offsets = [3, 0], sizes = [1, 128], strides = [1, 1]} : vector<4x128xf32> to vector<1x128xf32>
    %cst_159 = arith.constant 9.99999974E-6 : f32
    %281 = vector.broadcast %cst_159 : f32 to vector<1x128xf32>
    %282 = arith.addf %279, %281 : vector<1x128xf32>
    %283 = math.rsqrt %282 : vector<1x128xf32>
    %284 = arith.mulf %280, %283 : vector<1x128xf32>
    %285 = vector.extract_strided_slice %17 {offsets = [3, 0], sizes = [1, 128], strides = [1, 1]} : vector<4x128xf32> to vector<1x128xf32>
    %286 = arith.mulf %273, %284 : vector<1x128xf32>
    %287 = arith.subf %285, %286 : vector<1x128xf32>
    %288 = vector.broadcast %284 : vector<1x128xf32> to vector<32x128xf32>
    %289 = arith.mulf %270, %288 : vector<32x128xf32>
    %290 = vector.broadcast %287 : vector<1x128xf32> to vector<32x128xf32>
    %291 = arith.addf %289, %290 : vector<32x128xf32>
    %cst_160 = arith.constant 0.707106769 : f32
    %292 = vector.broadcast %cst_160 : f32 to vector<32x128xf32>
    %293 = arith.mulf %291, %292 : vector<32x128xf32>
    %cst_161 = arith.constant -4.000000e+00 : f32
    %cst_162 = arith.constant 4.000000e+00 : f32
    %294 = vector.broadcast %cst_161 : f32 to vector<32x128xf32>
    %295 = arith.maximumf %294, %293 : vector<32x128xf32>
    %296 = vector.broadcast %cst_162 : f32 to vector<32x128xf32>
    %297 = arith.minimumf %296, %295 : vector<32x128xf32>
    %298 = arith.mulf %297, %297 : vector<32x128xf32>
    %cst_163 = arith.constant -2.72614237E-10 : f32
    %299 = vector.broadcast %cst_163 : f32 to vector<32x128xf32>
    %300 = arith.mulf %299, %298 : vector<32x128xf32>
    %cst_164 = arith.constant 2.77068146E-8 : f32
    %301 = vector.broadcast %cst_164 : f32 to vector<32x128xf32>
    %302 = arith.addf %300, %301 : vector<32x128xf32>
    %303 = arith.mulf %302, %298 : vector<32x128xf32>
    %cst_165 = arith.constant -2.10102394E-6 : f32
    %304 = vector.broadcast %cst_165 : f32 to vector<32x128xf32>
    %305 = arith.addf %303, %304 : vector<32x128xf32>
    %306 = arith.mulf %305, %298 : vector<32x128xf32>
    %cst_166 = arith.constant -5.69250624E-5 : f32
    %307 = vector.broadcast %cst_166 : f32 to vector<32x128xf32>
    %308 = arith.addf %306, %307 : vector<32x128xf32>
    %309 = arith.mulf %308, %298 : vector<32x128xf32>
    %cst_167 = arith.constant -7.34990637E-4 : f32
    %310 = vector.broadcast %cst_167 : f32 to vector<32x128xf32>
    %311 = arith.addf %309, %310 : vector<32x128xf32>
    %312 = arith.mulf %311, %298 : vector<32x128xf32>
    %cst_168 = arith.constant -2.954600e-03 : f32
    %313 = vector.broadcast %cst_168 : f32 to vector<32x128xf32>
    %314 = arith.addf %312, %313 : vector<32x128xf32>
    %315 = arith.mulf %314, %298 : vector<32x128xf32>
    %cst_169 = arith.constant -0.0160960332 : f32
    %316 = vector.broadcast %cst_169 : f32 to vector<32x128xf32>
    %317 = arith.addf %315, %316 : vector<32x128xf32>
    %318 = arith.mulf %317, %297 : vector<32x128xf32>
    %cst_170 = arith.constant -1.45660715E-5 : f32
    %319 = vector.broadcast %cst_170 : f32 to vector<32x128xf32>
    %320 = arith.mulf %319, %298 : vector<32x128xf32>
    %cst_171 = arith.constant -2.13374049E-4 : f32
    %321 = vector.broadcast %cst_171 : f32 to vector<32x128xf32>
    %322 = arith.addf %320, %321 : vector<32x128xf32>
    %323 = arith.mulf %322, %298 : vector<32x128xf32>
    %cst_172 = arith.constant -0.00168282702 : f32
    %324 = vector.broadcast %cst_172 : f32 to vector<32x128xf32>
    %325 = arith.addf %323, %324 : vector<32x128xf32>
    %326 = arith.mulf %325, %298 : vector<32x128xf32>
    %cst_173 = arith.constant -0.00737332925 : f32
    %327 = vector.broadcast %cst_173 : f32 to vector<32x128xf32>
    %328 = arith.addf %326, %327 : vector<32x128xf32>
    %329 = arith.mulf %328, %298 : vector<32x128xf32>
    %cst_174 = arith.constant -0.0142647391 : f32
    %330 = vector.broadcast %cst_174 : f32 to vector<32x128xf32>
    %331 = arith.addf %329, %330 : vector<32x128xf32>
    %cst_175 = arith.constant 5.000000e-01 : f32
    %332 = vector.broadcast %cst_175 : f32 to vector<32x128xf32>
    %333 = arith.mulf %332, %291 : vector<32x128xf32>
    %334 = arith.divf %318, %331 : vector<32x128xf32>
    %cst_176 = arith.constant 1.000000e+00 : f32
    %335 = vector.broadcast %cst_176 : f32 to vector<32x128xf32>
    %336 = arith.addf %335, %334 : vector<32x128xf32>
    %337 = arith.mulf %333, %336 : vector<32x128xf32>
    %c0_177 = arith.constant 0 : index
    %c0_178 = arith.constant 0 : index
    %338 = vector.load %arg12[%c0_177, %c0_178] : memref<32x128xf32, #tpu.memory_space<vmem>>, vector<32x128xf32>
    tpu.vector_store %arg12[%c0_177, %c0_178], %337 {strides = array<i32>} : memref<32x128xf32, #tpu.memory_space<vmem>>, vector<32x128xf32>,
    return
  }
}

</mosaic_0001>

<llo_original>
// kernel: tile.58
$region0: #{tile.58}
  #allocation0 [shape = 's32[1]{0}', space=sflag, size = 0x4, scoped, tag = 'scoped memory for tile.58']
  %s0 = inlined_call_operand.vmem [shape: f32[8], index: 0, kind: input, shape index: {}]
  %s1 = inlined_call_operand.vmem [shape: f32[16,8], index: 1, kind: output, shape index: {}]
  // Predicated region
  $region2: #{tile.58} parent=0 // pred_check
    _
  $region3: #{tile.58} parent=0 // pred_check_branch
    %3 = sbr.rel (0) target = $region5
  $region4: #{tile.58} parent=0 // pred_region
    _
  $region5: #{tile.58} parent=0 // pred_fallthru
    _
  %v4 = vld [vmem:[%s0] ss:$0 sm:$0xff]
  %5 = vst [vmem:[%s1] sm:$0xff] %v4
  %s6 = scalar_lea.vmem %s1, 8
  %7 = vst [vmem:[%s6] sm:$0xff] %v4

// kernel: tile.71
$region0: #{tile.71}
  %s0 = inlined_call_operand.vmem [shape: f32[16,8], index: 0, kind: input, shape index: {}]
  %s1 = inlined_call_operand.vmem [shape: f32[1,128], index: 1, kind: output, shape index: {}]
  $region1: #{tile.71} parent=0
    #allocation0 [shape = 'u8[4096]{0}', space=vmem, size = 0x1000, scoped, tag = 'scoped mem for output reshape']
    %v2 = vld [vmem:[%s0] sm:$0x1]
    %vm3 = vcmask 64512
    %4 = vst.msk [vmem:[#allocation0] sm:$0x1] %vm3, %v2
    %s5 = scalar_lea.vmem %s0, 15
    %v6 = vld [vmem:[%s5] sm:$0x1]
    %7 = vrot.lane.b32.xlu0 %v6, 120
    %v8 = vpop.permute.xlu0 %7
    %vm9 = vcmask 1048512
    %10 = vst.msk [vmem:[#allocation0] sm:$0x1] %vm9, %v8
    %s11 = scalar_lea.vmem %s0, 14
    %v12 = vld [vmem:[%s11] sm:$0x1]
    %13 = vrot.lane.b32.xlu0 %v12, 112
    %v14 = vpop.permute.xlu0 %13
    %vm15 = vcmask 982912
    %16 = vst.msk [vmem:[#allocation0] sm:$0x1] %vm15, %v14
    %s17 = scalar_lea.vmem %s0, 13
    %v18 = vld [vmem:[%s17] sm:$0x1]
    %19 = vrot.lane.b32.xlu0 %v18, 104
    %v20 = vpop.permute.xlu0 %19
    %vm21 = vcmask 917312
    %22 = vst.msk [vmem:[#allocation0] sm:$0x1] %vm21, %v20
    %s23 = scalar_lea.vmem %s0, 12
    %v24 = vld [vmem:[%s23] sm:$0x1]
    %25 = vrot.lane.b32.xlu0 %v24, 96
    %v26 = vpop.permute.xlu0 %25
    %vm27 = vcmask 851712
    %28 = vst.msk [vmem:[#allocation0] sm:$0x1] %vm27, %v26
    %s29 = scalar_lea.vmem %s0, 11
    %v30 = vld [vmem:[%s29] sm:$0x1]
    %31 = vrot.lane.b32.xlu0 %v30, 88
    %v32 = vpop.permute.xlu0 %31
    %vm33 = vcmask 786112
    %34 = vst.msk [vmem:[#allocation0] sm:$0x1] %vm33, %v32
    %s35 = scalar_lea.vmem %s0, 10
    %v36 = vld [vmem:[%s35] sm:$0x1]
    %37 = vrot.lane.b32.xlu0 %v36, 80
    %v38 = vpop.permute.xlu0 %37
    %vm39 = vcmask 720512
    %40 = vst.msk [vmem:[#allocation0] sm:$0x1] %vm39, %v38
    %s41 = scalar_lea.vmem %s0, 9
    %v42 = vld [vmem:[%s41] sm:$0x1]
    %43 = vrot.lane.b32.xlu0 %v42, 72
    %v44 = vpop.permute.xlu0 %43
    %vm45 = vcmask 654912
    %46 = vst.msk [vmem:[#allocation0] sm:$0x1] %vm45, %v44
    %s47 = scalar_lea.vmem %s0, 8
    %v48 = vld [vmem:[%s47] sm:$0x1]
    %49 = vrot.lane.b32.xlu0 %v48, 64
    %v50 = vpop.permute.xlu0 %49
    %vm51 = vcmask 589312
    %52 = vst.msk [vmem:[#allocation0] sm:$0x1] %vm51, %v50
    %s53 = scalar_lea.vmem %s0, 7
    %v54 = vld [vmem:[%s53] sm:$0x1]
    %55 = vrot.lane.b32.xlu0 %v54, 56
    %v56 = vpop.permute.xlu0 %55
    %vm57 = vcmask 523712
    %58 = vst.msk [vmem:[#allocation0] sm:$0x1] %vm57, %v56
    %s59 = scalar_lea.vmem %s0, 6
    %v60 = vld [vmem:[%s59] sm:$0x1]
    %61 = vrot.lane.b32.xlu0 %v60, 48
    %v62 = vpop.permute.xlu0 %61
    %vm63 = vcmask 458112
    %64 = vst.msk [vmem:[#allocation0] sm:$0x1] %vm63, %v62
    %s65 = scalar_lea.vmem %s0, 5
    %v66 = vld [vmem:[%s65] sm:$0x1]
    %67 = vrot.lane.b32.xlu0 %v66, 40
    %v68 = vpop.permute.xlu0 %67
    %vm69 = vcmask 392512
    %70 = vst.msk [vmem:[#allocation0] sm:$0x1] %vm69, %v68
    %s71 = scalar_lea.vmem %s0, 4
    %v72 = vld [vmem:[%s71] sm:$0x1]
    %73 = vrot.lane.b32.xlu0 %v72, 32
    %v74 = vpop.permute.xlu0 %73
    %vm75 = vcmask 326912
    %76 = vst.msk [vmem:[#allocation0] sm:$0x1] %vm75, %v74
    %s77 = scalar_lea.vmem %s0, 3
    %v78 = vld [vmem:[%s77] sm:$0x1]
    %79 = vrot.lane.b32.xlu0 %v78, 24
    %v80 = vpop.permute.xlu0 %79
    %vm81 = vcmask 261312
    %82 = vst.msk [vmem:[#allocation0] sm:$0x1] %vm81, %v80
    %s83 = scalar_lea.vmem %s0, 2
    %v84 = vld [vmem:[%s83] sm:$0x1]
    %85 = vrot.lane.b32.xlu0 %v84, 16
    %v86 = vpop.permute.xlu0 %85
    %vm87 = vcmask 195712
    %88 = vst.msk [vmem:[#allocation0] sm:$0x1] %vm87, %v86
    %s89 = scalar_lea.vmem %s0, 1
    %v90 = vld [vmem:[%s89] sm:$0x1]
    %91 = vrot.lane.b32.xlu0 %v90, 8
    %v92 = vpop.permute.xlu0 %91
    %vm93 = vcmask 130112
    %94 = vst.msk [vmem:[#allocation0] sm:$0x1] %vm93, %v92
    %s96 = ssub.s32 2, 1
    %v97 = vld [vmem:[#allocation0] sm:%s96]
    %s99 = ssub.s32 2, 1
    %100 = vst [vmem:[%s1] sm:%s99] %v97

// kernel: u_decoder_forward.1
$region0: #{u_decoder_forward.1}
  #allocation0 [shape = 'u32[]', space=smem, size = 0x4, offset = 0x4, fixed_abs, tag = 'smem constant byte address 0x4 - core index']
  #allocation1 [shape = 'u32[72,128]{1,0:T(1,128)}', space=vmem, size = 0x9000, scoped, tag = 'internal scratch']
  %s0 = inlined_call_operand.vmem [shape: f32[16,64], index: 0, kind: input, shape index: {}]
  %s1 = inlined_call_operand.vmem [shape: f32[32,16], index: 1, kind: input, shape index: {}]
  %s2 = inlined_call_operand.vmem [shape: f32[32,16], index: 2, kind: input, shape index: {}]
  %s3 = inlined_call_operand.vmem [shape: f32[64,128], index: 3, kind: input, shape index: {}]
  %s4 = inlined_call_operand.vmem [shape: f32[64,128], index: 4, kind: input, shape index: {}]
  %s5 = inlined_call_operand.vmem [shape: f32[1,128], index: 5, kind: input, shape index: {}]
  %s6 = inlined_call_operand.vmem [shape: f32[32,32], index: 6, kind: input, shape index: {}]
  %s7 = inlined_call_operand.vmem [shape: f32[32,32], index: 7, kind: input, shape index: {}]
  %s8 = inlined_call_operand.vmem [shape: f32[4,3,128,128], index: 8, kind: input, shape index: {}]
  %s9 = inlined_call_operand.vmem [shape: f32[4,128], index: 9, kind: input, shape index: {}]
  %s10 = inlined_call_operand.vmem [shape: f32[4,128], index: 10, kind: input, shape index: {}]
  %s11 = inlined_call_operand.vmem [shape: f32[128,128], index: 11, kind: input, shape index: {}]
  %s12 = inlined_call_operand.vmem [shape: f32[32,128], index: 12, kind: output, shape index: {}]
  %s13 = sld [smem:[#allocation0]]
  $region58: #{u_decoder_forward.1} parent=0
    _
  %s15 = ssub.s32 1, %s13
  %s16 = scalar_select 0, %s15, %s13
  // Predicated region
  $region2: #{u_decoder_forward.1} parent=0 // pred_check
    _
  $region3: #{u_decoder_forward.1} parent=0 // pred_check_branch
    %18 = sbr.rel (0) target = $region5
  $region4: #{u_decoder_forward.1} parent=0 // pred_region
    _
  $region5: #{u_decoder_forward.1} parent=0 // pred_fallthru
    _
  // Predicated region
  $region6: #{u_decoder_forward.1} parent=0 // pred_check
    _
  $region7: #{u_decoder_forward.1} parent=0 // pred_check_branch
    %20 = sbr.rel (0) target = $region9
  $region8: #{u_decoder_forward.1} parent=0 // pred_region
    _
  $region9: #{u_decoder_forward.1} parent=0 // pred_fallthru
    _
  // Predicated region
  $region10: #{u_decoder_forward.1} parent=0 // pred_check
    _
  $region11: #{u_decoder_forward.1} parent=0 // pred_check_branch
    %22 = sbr.rel (0) target = $region13
  $region12: #{u_decoder_forward.1} parent=0 // pred_region
    _
  $region13: #{u_decoder_forward.1} parent=0 // pred_fallthru
    _
  // Predicated region
  $region14: #{u_decoder_forward.1} parent=0 // pred_check
    _
  $region15: #{u_decoder_forward.1} parent=0 // pred_check_branch
    %24 = sbr.rel (0) target = $region17
  $region16: #{u_decoder_forward.1} parent=0 // pred_region
    _
  $region17: #{u_decoder_forward.1} parent=0 // pred_fallthru
    _
  // Predicated region
  $region18: #{u_decoder_forward.1} parent=0 // pred_check
    _
  $region19: #{u_decoder_forward.1} parent=0 // pred_check_branch
    %26 = sbr.rel (0) target = $region21
  $region20: #{u_decoder_forward.1} parent=0 // pred_region
    _
  $region21: #{u_decoder_forward.1} parent=0 // pred_fallthru
    _
  // Predicated region
  $region22: #{u_decoder_forward.1} parent=0 // pred_check
    _
  $region23: #{u_decoder_forward.1} parent=0 // pred_check_branch
    %28 = sbr.rel (0) target = $region25
  $region24: #{u_decoder_forward.1} parent=0 // pred_region
    _
  $region25: #{u_decoder_forward.1} parent=0 // pred_fallthru
    _
  // Predicated region
  $region26: #{u_decoder_forward.1} parent=0 // pred_check
    _
  $region27: #{u_decoder_forward.1} parent=0 // pred_check_branch
    %30 = sbr.rel (0) target = $region29
  $region28: #{u_decoder_forward.1} parent=0 // pred_region
    _
  $region29: #{u_decoder_forward.1} parent=0 // pred_fallthru
    _
  // Predicated region
  $region30: #{u_decoder_forward.1} parent=0 // pred_check
    _
  $region31: #{u_decoder_forward.1} parent=0 // pred_check_branch
    %32 = sbr.rel (0) target = $region33
  $region32: #{u_decoder_forward.1} parent=0 // pred_region
    _
  $region33: #{u_decoder_forward.1} parent=0 // pred_fallthru
    _
  // Predicated region
  $region34: #{u_decoder_forward.1} parent=0 // pred_check
    _
  $region35: #{u_decoder_forward.1} parent=0 // pred_check_branch
    %34 = sbr.rel (0) target = $region37
  $region36: #{u_decoder_forward.1} parent=0 // pred_region
    _
  $region37: #{u_decoder_forward.1} parent=0 // pred_fallthru
    _
  // Predicated region
  $region38: #{u_decoder_forward.1} parent=0 // pred_check
    _
  $region39: #{u_decoder_forward.1} parent=0 // pred_check_branch
    %36 = sbr.rel (0) target = $region41
  $region40: #{u_decoder_forward.1} parent=0 // pred_region
    _
  $region41: #{u_decoder_forward.1} parent=0 // pred_fallthru
    _
  // Predicated region
  $region42: #{u_decoder_forward.1} parent=0 // pred_check
    _
  $region43: #{u_decoder_forward.1} parent=0 // pred_check_branch
    %38 = sbr.rel (0) target = $region45
  $region44: #{u_decoder_forward.1} parent=0 // pred_region
    _
  $region45: #{u_decoder_forward.1} parent=0 // pred_fallthru
    _
  // Predicated region
  $region46: #{u_decoder_forward.1} parent=0 // pred_check
    _
  $region47: #{u_decoder_forward.1} parent=0 // pred_check_branch
    %40 = sbr.rel (0) target = $region49
  $region48: #{u_decoder_forward.1} parent=0 // pred_region
    _
  $region49: #{u_decoder_forward.1} parent=0 // pred_fallthru
    _
  %v41 = vld [vmem:[%s0] sm:$0xff]
  %v42 = vld [vmem:[%s0 + $0x8] sm:$0xff]
  %v43 = vld [vmem:[%s1] sm:$0xff]
  %v44 = vld [vmem:[%s1 + $0x8] sm:$0xff]
  %v45 = vld [vmem:[%s1 + $0x10] sm:$0xff]
  %v46 = vld [vmem:[%s1 + $0x18] sm:$0xff]
  %v47 = vld [vmem:[%s3] sm:$0xff]
  %v48 = vld [vmem:[%s3 + $0x8] sm:$0xff]
  %v49 = vld [vmem:[%s3 + $0x10] sm:$0xff]
  %v50 = vld [vmem:[%s3 + $0x18] sm:$0xff]
  %v51 = vld [vmem:[%s3 + $0x20] sm:$0xff]
  %v52 = vld [vmem:[%s3 + $0x28] sm:$0xff]
  %v53 = vld [vmem:[%s3 + $0x30] sm:$0xff]
  %v54 = vld [vmem:[%s3 + $0x38] sm:$0xff]
  %vm55 = vcmask 523264
  %v57 = vsel %vm55, %v41, 0
  %v60 = vsel %vm55, %v42, 0
  %62 = vmatpush.msra.mxu0 0.0
  %63 = vmatpush.msra.mxu0 0.0
  %64 = vmatpush.msra.mxu0 0.0
  %65 = vmatpush.msra.mxu0 0.0
  %66 = vmatpush.msra.mxu0 0.0
  %67 = vmatpush.msra.mxu0 0.0
  %68 = vmatpush.msra.mxu0 0.0
  %69 = vmatpush.msra.mxu0 0.0
  %70 = vmatpush.msra.mxu0 %v54
  %71 = vmatpush.msra.mxu0 %v53
  %72 = vmatpush.msra.mxu0 %v52
  %73 = vmatpush.msra.mxu0 %v51
  %74 = vmatpush.msra.mxu0 %v50
  %75 = vmatpush.msra.mxu0 %v49
  %76 = vmatpush.msra.mxu0 %v48
  %77 = vmatpush.msra.mxu0 %v47
  %78 = vmatmul.f32.gmra.mxu0 %v57
  %v79 = vpop.f32.mrf.mxu0
  %v80 = vadd.f32 0.0, %v79
  %81 = vmatmul.f32.gmra.mxu0 %v60
  %v82 = vpop.f32.mrf.mxu0
  %v83 = vadd.f32 0.0, %v82
  %84 = vdwg.mxu0
  %v85 = vld [vmem:[%s2] sm:$0xff]
  %v86 = vld [vmem:[%s2 + $0x8] sm:$0xff]
  %v87 = vld [vmem:[%s2 + $0x10] sm:$0xff]
  %v88 = vld [vmem:[%s2 + $0x18] sm:$0xff]
  %v89 = vld [vmem:[%s4] sm:$0xff]
  %v90 = vld [vmem:[%s4 + $0x8] sm:$0xff]
  %v91 = vld [vmem:[%s4 + $0x10] sm:$0xff]
  %v92 = vld [vmem:[%s4 + $0x18] sm:$0xff]
  %v93 = vld [vmem:[%s4 + $0x20] sm:$0xff]
  %v94 = vld [vmem:[%s4 + $0x28] sm:$0xff]
  %v95 = vld [vmem:[%s4 + $0x30] sm:$0xff]
  %v96 = vld [vmem:[%s4 + $0x38] sm:$0xff]
  %97 = vmatpush.msra.mxu0 0.0
  %98 = vmatpush.msra.mxu0 0.0
  %99 = vmatpush.msra.mxu0 0.0
  %100 = vmatpush.msra.mxu0 0.0
  %101 = vmatpush.msra.mxu0 0.0
  %102 = vmatpush.msra.mxu0 0.0
  %103 = vmatpush.msra.mxu0 0.0
  %104 = vmatpush.msra.mxu0 0.0
  %105 = vmatpush.msra.mxu0 %v96
  %106 = vmatpush.msra.mxu0 %v95
  %107 = vmatpush.msra.mxu0 %v94
  %108 = vmatpush.msra.mxu0 %v93
  %109 = vmatpush.msra.mxu0 %v92
  %110 = vmatpush.msra.mxu0 %v91
  %111 = vmatpush.msra.mxu0 %v90
  %112 = vmatpush.msra.mxu0 %v89
  %113 = vmatmul.f32.gmra.mxu0 %v57
  %v114 = vpop.f32.mrf.mxu0
  %v115 = vadd.f32 0.0, %v114
  %116 = vmatmul.f32.gmra.mxu0 %v60
  %v117 = vpop.f32.mrf.mxu0
  %v118 = vadd.f32 0.0, %v117
  %119 = vdwg.mxu0
  %vm120 = vcmask 130048
  %v122 = vsel %vm120, %v85, 0
  %v125 = vsel %vm120, %v86, 0
  %v128 = vsel %vm120, %v87, 0
  %v131 = vsel %vm120, %v88, 0
  %133 = vmatpush.msra.mxu0 0.0
  %134 = vmatpush.msra.mxu0 0.0
  %135 = vmatpush.msra.mxu0 0.0
  %136 = vmatpush.msra.mxu0 0.0
  %137 = vmatpush.msra.mxu0 0.0
  %138 = vmatpush.msra.mxu0 0.0
  %139 = vmatpush.msra.mxu0 0.0
  %140 = vmatpush.msra.mxu0 0.0
  %141 = vmatpush.msra.mxu0 0.0
  %142 = vmatpush.msra.mxu0 0.0
  %143 = vmatpush.msra.mxu0 0.0
  %144 = vmatpush.msra.mxu0 0.0
  %145 = vmatpush.msra.mxu0 0.0
  %146 = vmatpush.msra.mxu0 0.0
  %147 = vmatpush.msra.mxu0 %v118
  %148 = vmatpush.msra.mxu0 %v115
  %149 = vmatmul.f32.gmra.mxu0 %v122
  %v150 = vpop.f32.mrf.mxu0
  %v151 = vadd.f32 0.0, %v150
  %152 = vmatmul.f32.gmra.mxu0 %v125
  %v153 = vpop.f32.mrf.mxu0
  %v154 = vadd.f32 0.0, %v153
  %155 = vmatmul.f32.gmra.mxu0 %v128
  %v156 = vpop.f32.mrf.mxu0
  %v157 = vadd.f32 0.0, %v156
  %158 = vmatmul.f32.gmra.mxu0 %v131
  %v159 = vpop.f32.mrf.mxu0
  %v160 = vadd.f32 0.0, %v159
  %161 = vdwg.mxu0
  %v163 = vsel %vm120, %v43, 0
  %v166 = vsel %vm120, %v44, 0
  %v169 = vsel %vm120, %v45, 0
  %v172 = vsel %vm120, %v46, 0
  %174 = vmatpush.msra.mxu0 0.0
  %175 = vmatpush.msra.mxu0 0.0
  %176 = vmatpush.msra.mxu0 0.0
  %177 = vmatpush.msra.mxu0 0.0
  %178 = vmatpush.msra.mxu0 0.0
  %179 = vmatpush.msra.mxu0 0.0
  %180 = vmatpush.msra.mxu0 0.0
  %181 = vmatpush.msra.mxu0 0.0
  %182 = vmatpush.msra.mxu0 0.0
  %183 = vmatpush.msra.mxu0 0.0
  %184 = vmatpush.msra.mxu0 0.0
  %185 = vmatpush.msra.mxu0 0.0
  %186 = vmatpush.msra.mxu0 0.0
  %187 = vmatpush.msra.mxu0 0.0
  %188 = vmatpush.msra.mxu0 %v83
  %189 = vmatpush.msra.mxu0 %v80
  %190 = vmatmul.f32.gmra.mxu0 %v163
  %v191 = vpop.f32.mrf.mxu0
  %v192 = vadd.f32 %v151, %v191
  %193 = vmatmul.f32.gmra.mxu0 %v166
  %v194 = vpop.f32.mrf.mxu0
  %v195 = vadd.f32 %v154, %v194
  %196 = vmatmul.f32.gmra.mxu0 %v169
  %v197 = vpop.f32.mrf.mxu0
  %v198 = vadd.f32 %v157, %v197
  %199 = vmatmul.f32.gmra.mxu0 %v172
  %v200 = vpop.f32.mrf.mxu0
  %v201 = vadd.f32 %v160, %v200
  %202 = vdwg.mxu0
  %v203 = vld [vmem:[%s5] sm:$0x1]
  %v205 = vperm.slane %v203, 0
  %v207 = vadd.f32 %v192, %v205
  %v208 = vadd.f32 %v195, %v205
  %v209 = vadd.f32 %v198, %v205
  %v210 = vadd.f32 %v201, %v205
  %v211 = vld [vmem:[%s6] sm:$0xff]
  %v212 = vld [vmem:[%s6 + $0x8] sm:$0xff]
  %v213 = vld [vmem:[%s6 + $0x10] sm:$0xff]
  %v214 = vld [vmem:[%s6 + $0x18] sm:$0xff]
  %v215 = vld [vmem:[%s7] sm:$0xff]
  %v216 = vld [vmem:[%s7 + $0x8] sm:$0xff]
  %v217 = vld [vmem:[%s7 + $0x10] sm:$0xff]
  %v218 = vld [vmem:[%s7 + $0x18] sm:$0xff]
  %v219 = vld [vmem:[%s11] sm:$0xff]
  %v220 = vld [vmem:[%s11 + $0x8] sm:$0xff]
  %v221 = vld [vmem:[%s11 + $0x10] sm:$0xff]
  %v222 = vld [vmem:[%s11 + $0x18] sm:$0xff]
  %v223 = vld [vmem:[%s11 + $0x20] sm:$0xff]
  %v224 = vld [vmem:[%s11 + $0x28] sm:$0xff]
  %v225 = vld [vmem:[%s11 + $0x30] sm:$0xff]
  %v226 = vld [vmem:[%s11 + $0x38] sm:$0xff]
  %v227 = vld [vmem:[%s11 + $0x40] sm:$0xff]
  %v228 = vld [vmem:[%s11 + $0x48] sm:$0xff]
  %v229 = vld [vmem:[%s11 + $0x50] sm:$0xff]
  %v230 = vld [vmem:[%s11 + $0x58] sm:$0xff]
  %v231 = vld [vmem:[%s11 + $0x60] sm:$0xff]
  %v232 = vld [vmem:[%s11 + $0x68] sm:$0xff]
  %v233 = vld [vmem:[%s11 + $0x70] sm:$0xff]
  %v234 = vld [vmem:[%s11 + $0x78] sm:$0xff]
  %v235 = vld [vmem:[%s9] sm:$0xf]
  %v236 = vld [vmem:[%s10] sm:$0xf]
  %vm237 = vcmask 261120
  %v239 = vsel %vm237, %v211, 0
  %v242 = vsel %vm237, %v212, 0
  %v245 = vsel %vm237, %v213, 0
  %v248 = vsel %vm237, %v214, 0
  %250 = vmatpush.msra.mxu0 0.0
  %251 = vmatpush.msra.mxu0 0.0
  %252 = vmatpush.msra.mxu0 0.0
  %253 = vmatpush.msra.mxu0 0.0
  %254 = vmatpush.msra.mxu0 0.0
  %255 = vmatpush.msra.mxu0 0.0
  %256 = vmatpush.msra.mxu0 0.0
  %257 = vmatpush.msra.mxu0 0.0
  %258 = vmatpush.msra.mxu0 0.0
  %259 = vmatpush.msra.mxu0 0.0
  %260 = vmatpush.msra.mxu0 0.0
  %261 = vmatpush.msra.mxu0 0.0
  %262 = vmatpush.msra.mxu0 %v210
  %263 = vmatpush.msra.mxu0 %v209
  %264 = vmatpush.msra.mxu0 %v208
  %265 = vmatpush.msra.mxu0 %v207
  %266 = vmatmul.f32.gmra.mxu0 %v239
  %v267 = vpop.f32.mrf.mxu0
  %v268 = vadd.f32 0.0, %v267
  %269 = vmatmul.f32.gmra.mxu0 %v242
  %v270 = vpop.f32.mrf.mxu0
  %v271 = vadd.f32 0.0, %v270
  %272 = vmatmul.f32.gmra.mxu0 %v245
  %v273 = vpop.f32.mrf.mxu0
  %v274 = vadd.f32 0.0, %v273
  %275 = vmatmul.f32.gmra.mxu0 %v248
  %v276 = vpop.f32.mrf.mxu0
  %v277 = vadd.f32 0.0, %v276
  %278 = vdwg.mxu0
  %v280 = vsel %vm237, %v215, 0
  %v283 = vsel %vm237, %v216, 0
  %v286 = vsel %vm237, %v217, 0
  %v289 = vsel %vm237, %v218, 0
  %291 = vmatpush.msra.mxu0 0.0
  %292 = vmatpush.msra.mxu0 0.0
  %293 = vmatpush.msra.mxu0 0.0
  %294 = vmatpush.msra.mxu0 0.0
  %295 = vmatpush.msra.mxu0 0.0
  %296 = vmatpush.msra.mxu0 0.0
  %297 = vmatpush.msra.mxu0 0.0
  %298 = vmatpush.msra.mxu0 0.0
  %299 = vmatpush.msra.mxu0 0.0
  %300 = vmatpush.msra.mxu0 0.0
  %301 = vmatpush.msra.mxu0 0.0
  %302 = vmatpush.msra.mxu0 0.0
  %303 = vmatpush.msra.mxu0 %v210
  %304 = vmatpush.msra.mxu0 %v209
  %305 = vmatpush.msra.mxu0 %v208
  %306 = vmatpush.msra.mxu0 %v207
  %307 = vmatmul.f32.gmra.mxu0 %v280
  %v308 = vpop.f32.mrf.mxu0
  %v309 = vadd.f32 0.0, %v308
  %310 = vmatmul.f32.gmra.mxu0 %v283
  %v311 = vpop.f32.mrf.mxu0
  %v312 = vadd.f32 0.0, %v311
  %313 = vmatmul.f32.gmra.mxu0 %v286
  %v314 = vpop.f32.mrf.mxu0
  %v315 = vadd.f32 0.0, %v314
  %316 = vmatmul.f32.gmra.mxu0 %v289
  %v317 = vpop.f32.mrf.mxu0
  %v318 = vadd.f32 0.0, %v317
  %319 = vdwg.mxu0
  %v320 = vld [vmem:[%s8] sm:$0xff]
  %v321 = vld [vmem:[%s8 + $0x8] sm:$0xff]
  %v322 = vld [vmem:[%s8 + $0x10] sm:$0xff]
  %v323 = vld [vmem:[%s8 + $0x18] sm:$0xff]
  %v324 = vld [vmem:[%s8 + $0x20] sm:$0xff]
  %v325 = vld [vmem:[%s8 + $0x28] sm:$0xff]
  %v326 = vld [vmem:[%s8 + $0x30] sm:$0xff]
  %v327 = vld [vmem:[%s8 + $0x38] sm:$0xff]
  %v328 = vld [vmem:[%s8 + $0x40] sm:$0xff]
  %v329 = vld [vmem:[%s8 + $0x48] sm:$0xff]
  %v330 = vld [vmem:[%s8 + $0x50] sm:$0xff]
  %v331 = vld [vmem:[%s8 + $0x58] sm:$0xff]
  %v332 = vld [vmem:[%s8 + $0x60] sm:$0xff]
  %v333 = vld [vmem:[%s8 + $0x68] sm:$0xff]
  %v334 = vld [vmem:[%s8 + $0x70] sm:$0xff]
  %v335 = vld [vmem:[%s8 + $0x78] sm:$0xff]
  %s336 = scalar_lea.vmem %s8, 128
  %v337 = vld [vmem:[%s336] sm:$0xff]
  %v338 = vld [vmem:[%s336 + $0x8] sm:$0xff]
  %v339 = vld [vmem:[%s336 + $0x10] sm:$0xff]
  %v340 = vld [vmem:[%s336 + $0x18] sm:$0xff]
  %v341 = vld [vmem:[%s336 + $0x20] sm:$0xff]
  %v342 = vld [vmem:[%s336 + $0x28] sm:$0xff]
  %v343 = vld [vmem:[%s336 + $0x30] sm:$0xff]
  %v344 = vld [vmem:[%s336 + $0x38] sm:$0xff]
  %v345 = vld [vmem:[%s336 + $0x40] sm:$0xff]
  %v346 = vld [vmem:[%s336 + $0x48] sm:$0xff]
  %v347 = vld [vmem:[%s336 + $0x50] sm:$0xff]
  %v348 = vld [vmem:[%s336 + $0x58] sm:$0xff]
  %v349 = vld [vmem:[%s336 + $0x60] sm:$0xff]
  %v350 = vld [vmem:[%s336 + $0x68] sm:$0xff]
  %v351 = vld [vmem:[%s336 + $0x70] sm:$0xff]
  %v352 = vld [vmem:[%s336 + $0x78] sm:$0xff]
  %353 = vmatpush.msra.mxu0 %v352
  %354 = vmatpush.msra.mxu0 %v351
  %355 = vmatpush.msra.mxu0 %v350
  %356 = vmatpush.msra.mxu0 %v349
  %357 = vmatpush.msra.mxu0 %v348
  %358 = vmatpush.msra.mxu0 %v347
  %359 = vmatpush.msra.mxu0 %v346
  %360 = vmatpush.msra.mxu0 %v345
  %361 = vmatpush.msra.mxu0 %v344
  %362 = vmatpush.msra.mxu0 %v343
  %363 = vmatpush.msra.mxu0 %v342
  %364 = vmatpush.msra.mxu0 %v341
  %365 = vmatpush.msra.mxu0 %v340
  %366 = vmatpush.msra.mxu0 %v339
  %367 = vmatpush.msra.mxu0 %v338
  %368 = vmatpush.msra.mxu0 %v337
  %369 = vmatmul.f32.gmra.mxu0 %v207
  %v370 = vpop.f32.mrf.mxu0
  %v371 = vadd.f32 0.0, %v370
  %372 = vmatmul.f32.gmra.mxu0 %v208
  %v373 = vpop.f32.mrf.mxu0
  %v374 = vadd.f32 0.0, %v373
  %375 = vmatmul.f32.gmra.mxu0 %v209
  %v376 = vpop.f32.mrf.mxu0
  %v377 = vadd.f32 0.0, %v376
  %378 = vmatmul.f32.gmra.mxu0 %v210
  %v379 = vpop.f32.mrf.mxu0
  %v380 = vadd.f32 0.0, %v379
  %381 = vdwg.mxu0
  %382 = vmatpush.msra.mxu0 %v335
  %383 = vmatpush.msra.mxu0 %v334
  %384 = vmatpush.msra.mxu0 %v333
  %385 = vmatpush.msra.mxu0 %v332
  %386 = vmatpush.msra.mxu0 %v331
  %387 = vmatpush.msra.mxu0 %v330
  %388 = vmatpush.msra.mxu0 %v329
  %389 = vmatpush.msra.mxu0 %v328
  %390 = vmatpush.msra.mxu0 %v327
  %391 = vmatpush.msra.mxu0 %v326
  %392 = vmatpush.msra.mxu0 %v325
  %393 = vmatpush.msra.mxu0 %v324
  %394 = vmatpush.msra.mxu0 %v323
  %395 = vmatpush.msra.mxu0 %v322
  %396 = vmatpush.msra.mxu0 %v321
  %397 = vmatpush.msra.mxu0 %v320
  %398 = vmatmul.f32.gmra.mxu0 %v268
  %v399 = vpop.f32.mrf.mxu0
  %v400 = vadd.f32 %v371, %v399
  %401 = vmatmul.f32.gmra.mxu0 %v271
  %v402 = vpop.f32.mrf.mxu0
  %v403 = vadd.f32 %v374, %v402
  %404 = vmatmul.f32.gmra.mxu0 %v274
  %v405 = vpop.f32.mrf.mxu0
  %v406 = vadd.f32 %v377, %v405
  %407 = vmatmul.f32.gmra.mxu0 %v277
  %v408 = vpop.f32.mrf.mxu0
  %v409 = vadd.f32 %v380, %v408
  %410 = vdwg.mxu0
  %s411 = scalar_lea.vmem %s8, 256
  %v412 = vld [vmem:[%s411] sm:$0xff]
  %v413 = vld [vmem:[%s411 + $0x8] sm:$0xff]
  %v414 = vld [vmem:[%s411 + $0x10] sm:$0xff]
  %v415 = vld [vmem:[%s411 + $0x18] sm:$0xff]
  %v416 = vld [vmem:[%s411 + $0x20] sm:$0xff]
  %v417 = vld [vmem:[%s411 + $0x28] sm:$0xff]
  %v418 = vld [vmem:[%s411 + $0x30] sm:$0xff]
  %v419 = vld [vmem:[%s411 + $0x38] sm:$0xff]
  %v420 = vld [vmem:[%s411 + $0x40] sm:$0xff]
  %v421 = vld [vmem:[%s411 + $0x48] sm:$0xff]
  %v422 = vld [vmem:[%s411 + $0x50] sm:$0xff]
  %v423 = vld [vmem:[%s411 + $0x58] sm:$0xff]
  %v424 = vld [vmem:[%s411 + $0x60] sm:$0xff]
  %v425 = vld [vmem:[%s411 + $0x68] sm:$0xff]
  %v426 = vld [vmem:[%s411 + $0x70] sm:$0xff]
  %v427 = vld [vmem:[%s411 + $0x78] sm:$0xff]
  %428 = vmatpush.msra.mxu0 %v427
  %429 = vmatpush.msra.mxu0 %v426
  %430 = vmatpush.msra.mxu0 %v425
  %431 = vmatpush.msra.mxu0 %v424
  %432 = vmatpush.msra.mxu0 %v423
  %433 = vmatpush.msra.mxu0 %v422
  %434 = vmatpush.msra.mxu0 %v421
  %435 = vmatpush.msra.mxu0 %v420
  %436 = vmatpush.msra.mxu0 %v419
  %437 = vmatpush.msra.mxu0 %v418
  %438 = vmatpush.msra.mxu0 %v417
  %439 = vmatpush.msra.mxu0 %v416
  %440 = vmatpush.msra.mxu0 %v415
  %441 = vmatpush.msra.mxu0 %v414
  %442 = vmatpush.msra.mxu0 %v413
  %443 = vmatpush.msra.mxu0 %v412
  %444 = vmatmul.f32.gmra.mxu0 %v309
  %v445 = vpop.f32.mrf.mxu0
  %v446 = vadd.f32 0.0, %v445
  %447 = vmatmul.f32.gmra.mxu0 %v312
  %v448 = vpop.f32.mrf.mxu0
  %v449 = vadd.f32 0.0, %v448
  %450 = vmatmul.f32.gmra.mxu0 %v315
  %v451 = vpop.f32.mrf.mxu0
  %v452 = vadd.f32 0.0, %v451
  %453 = vmatmul.f32.gmra.mxu0 %v318
  %v454 = vpop.f32.mrf.mxu0
  %v455 = vadd.f32 0.0, %v454
  %456 = vdwg.mxu0
  %v457 = vadd.f32 %v400, %v446
  %v458 = vadd.f32 %v403, %v449
  %v459 = vadd.f32 %v406, %v452
  %v460 = vadd.f32 %v409, %v455
  %461 = vmatpush.msra.mxu0 %v234
  %462 = vmatpush.msra.mxu0 %v233
  %463 = vmatpush.msra.mxu0 %v232
  %464 = vmatpush.msra.mxu0 %v231
  %465 = vmatpush.msra.mxu0 %v230
  %466 = vmatpush.msra.mxu0 %v229
  %467 = vmatpush.msra.mxu0 %v228
  %468 = vmatpush.msra.mxu0 %v227
  %469 = vmatpush.msra.mxu0 %v226
  %470 = vmatpush.msra.mxu0 %v225
  %471 = vmatpush.msra.mxu0 %v224
  %472 = vmatpush.msra.mxu0 %v223
  %473 = vmatpush.msra.mxu0 %v222
  %474 = vmatpush.msra.mxu0 %v221
  %475 = vmatpush.msra.mxu0 %v220
  %476 = vmatpush.msra.mxu0 %v219
  %477 = vmatmul.f32.gmra.mxu0 %v457
  %v478 = vpop.f32.mrf.mxu0
  %v479 = vadd.f32 0.0, %v478
  %480 = vmatmul.f32.gmra.mxu0 %v458
  %v481 = vpop.f32.mrf.mxu0
  %v482 = vadd.f32 0.0, %v481
  %483 = vmatmul.f32.gmra.mxu0 %v459
  %v484 = vpop.f32.mrf.mxu0
  %v485 = vadd.f32 0.0, %v484
  %486 = vmatmul.f32.gmra.mxu0 %v460
  %v487 = vpop.f32.mrf.mxu0
  %v488 = vadd.f32 0.0, %v487
  %489 = vdwg.mxu0
  %v490 = vadd.f32 %v479, %v482
  %v491 = vadd.f32 %v490, %v485
  %v492 = vadd.f32 %v491, %v488
  %v493 = vrot.slane %v492, 4
  %v494 = vadd.f32 %v492, %v493
  %v495 = vrot.slane %v494, 2
  %v496 = vadd.f32 %v494, %v495
  %v497 = vrot.slane %v496, 1
  %v498 = vadd.f32 %v496, %v497
  %v499 = vmul.f32 %v457, %v457
  %v500 = vmul.f32 %v458, %v458
  %v501 = vmul.f32 %v459, %v459
  %v502 = vmul.f32 %v460, %v460
  %503 = vmatpush.msra.mxu0 %v234
  %504 = vmatpush.msra.mxu0 %v233
  %505 = vmatpush.msra.mxu0 %v232
  %506 = vmatpush.msra.mxu0 %v231
  %507 = vmatpush.msra.mxu0 %v230
  %508 = vmatpush.msra.mxu0 %v229
  %509 = vmatpush.msra.mxu0 %v228
  %510 = vmatpush.msra.mxu0 %v227
  %511 = vmatpush.msra.mxu0 %v226
  %512 = vmatpush.msra.mxu0 %v225
  %513 = vmatpush.msra.mxu0 %v224
  %514 = vmatpush.msra.mxu0 %v223
  %515 = vmatpush.msra.mxu0 %v222
  %516 = vmatpush.msra.mxu0 %v221
  %517 = vmatpush.msra.mxu0 %v220
  %518 = vmatpush.msra.mxu0 %v219
  %519 = vmatmul.f32.gmra.mxu0 %v499
  %v520 = vpop.f32.mrf.mxu0
  %v521 = vadd.f32 0.0, %v520
  %522 = vmatmul.f32.gmra.mxu0 %v500
  %v523 = vpop.f32.mrf.mxu0
  %v524 = vadd.f32 0.0, %v523
  %525 = vmatmul.f32.gmra.mxu0 %v501
  %v526 = vpop.f32.mrf.mxu0
  %v527 = vadd.f32 0.0, %v526
  %528 = vmatmul.f32.gmra.mxu0 %v502
  %v529 = vpop.f32.mrf.mxu0
  %v530 = vadd.f32 0.0, %v529
  %531 = vdwg.mxu0
  %v532 = vadd.f32 %v521, %v524
  %v533 = vadd.f32 %v532, %v527
  %v534 = vadd.f32 %v533, %v530
  %v535 = vrot.slane %v534, 4
  %v536 = vadd.f32 %v534, %v535
  %v537 = vrot.slane %v536, 2
  %v538 = vadd.f32 %v536, %v537
  %v539 = vrot.slane %v538, 1
  %v540 = vadd.f32 %v538, %v539
  %v541 = vmul.f32 %v498, %v498
  %v542 = vsub.f32 %v540, %v541
  %v543 = vadd.f32 %v542, 1e-05
  %v544 = vrsqrt.pop %v543
  %v545 = vmul.f32 %v544, %v543
  %v546 = vmul.f32 %v545, %v544
  %v547 = vmul.f32 0.5, %v546
  %v548 = vsub.f32 1.5, %v547
  %v549 = vmul.f32 %v544, %v548
  %vm550 = vweird.f32 %v543
  %vm551 = vweird.f32 %v544
  %vm552 = vmor %vm550, %vm551
  %v553 = vsel %vm552, %v544, %v549
  %v554 = vmul.f32 %v235, %v553
  %v555 = vmul.f32 %v498, %v554
  %v556 = vsub.f32 %v236, %v555
  %v557 = vperm.slane %v554, 0
  %v558 = vmul.f32 %v457, %v557
  %v559 = vmul.f32 %v458, %v557
  %v560 = vmul.f32 %v459, %v557
  %v561 = vmul.f32 %v460, %v557
  %v562 = vperm.slane %v556, 0
  %v563 = vadd.f32 %v558, %v562
  %v564 = vadd.f32 %v559, %v562
  %v565 = vadd.f32 %v560, %v562
  %v566 = vadd.f32 %v561, %v562
  %v567 = vmul.f32 %v563, 0.70710677
  %v568 = vmul.f32 %v564, 0.70710677
  %v569 = vmul.f32 %v565, 0.70710677
  %v570 = vmul.f32 %v566, 0.70710677
  %v571 = vmax.f32 %v567, -4.0
  %v572 = vmax.f32 %v568, -4.0
  %v573 = vmax.f32 %v569, -4.0
  %v574 = vmax.f32 %v570, -4.0
  %v575 = vmin.f32 %v571, 4.0
  %v576 = vmin.f32 %v572, 4.0
  %v577 = vmin.f32 %v573, 4.0
  %v578 = vmin.f32 %v574, 4.0
  %v579 = vmul.f32 %v575, %v575
  %v580 = vmul.f32 %v576, %v576
  %v581 = vmul.f32 %v577, %v577
  %v582 = vmul.f32 %v578, %v578
  %v583 = vmul.f32 %v579, -2.7261424e-10
  %v584 = vmul.f32 %v580, -2.7261424e-10
  %v585 = vmul.f32 %v581, -2.7261424e-10
  %v586 = vmul.f32 %v582, -2.7261424e-10
  %v587 = vadd.f32 %v583, 2.7706815e-08
  %v588 = vadd.f32 %v584, 2.7706815e-08
  %v589 = vadd.f32 %v585, 2.7706815e-08
  %v590 = vadd.f32 %v586, 2.7706815e-08
  %v591 = vmul.f32 %v587, %v579
  %v592 = vmul.f32 %v588, %v580
  %v593 = vmul.f32 %v589, %v581
  %v594 = vmul.f32 %v590, %v582
  %v595 = vadd.f32 %v591, -2.101024e-06
  %v596 = vadd.f32 %v592, -2.101024e-06
  %v597 = vadd.f32 %v593, -2.101024e-06
  %v598 = vadd.f32 %v594, -2.101024e-06
  %v599 = vmul.f32 %v595, %v579
  %v600 = vmul.f32 %v596, %v580
  %v601 = vmul.f32 %v597, %v581
  %v602 = vmul.f32 %v598, %v582
  %v603 = vadd.f32 %v599, -5.6925062e-05
  %v604 = vadd.f32 %v600, -5.6925062e-05
  %v605 = vadd.f32 %v601, -5.6925062e-05
  %v606 = vadd.f32 %v602, -5.6925062e-05
  %v607 = vmul.f32 %v603, %v579
  %v608 = vmul.f32 %v604, %v580
  %v609 = vmul.f32 %v605, %v581
  %v610 = vmul.f32 %v606, %v582
  %v611 = vadd.f32 %v607, -0.00073499064
  %v612 = vadd.f32 %v608, -0.00073499064
  %v613 = vadd.f32 %v609, -0.00073499064
  %v614 = vadd.f32 %v610, -0.00073499064
  %v615 = vmul.f32 %v611, %v579
  %v616 = vmul.f32 %v612, %v580
  %v617 = vmul.f32 %v613, %v581
  %v618 = vmul.f32 %v614, %v582
  %v619 = vadd.f32 %v615, -0.0029546
  %v620 = vadd.f32 %v616, -0.0029546
  %v621 = vadd.f32 %v617, -0.0029546
  %v622 = vadd.f32 %v618, -0.0029546
  %v623 = vmul.f32 %v619, %v579
  %v624 = vmul.f32 %v620, %v580
  %v625 = vmul.f32 %v621, %v581
  %v626 = vmul.f32 %v622, %v582
  %v627 = vadd.f32 %v623, -0.016096033
  %v628 = vadd.f32 %v624, -0.016096033
  %v629 = vadd.f32 %v625, -0.016096033
  %v630 = vadd.f32 %v626, -0.016096033
  %v631 = vmul.f32 %v627, %v575
  %v632 = vmul.f32 %v628, %v576
  %v633 = vmul.f32 %v629, %v577
  %v634 = vmul.f32 %v630, %v578
  %v635 = vmul.f32 %v579, -1.45660715e-05
  %v636 = vmul.f32 %v580, -1.45660715e-05
  %v637 = vmul.f32 %v581, -1.45660715e-05
  %v638 = vmul.f32 %v582, -1.45660715e-05
  %v639 = vadd.f32 %v635, -0.00021337405
  %v640 = vadd.f32 %v636, -0.00021337405
  %v641 = vadd.f32 %v637, -0.00021337405
  %v642 = vadd.f32 %v638, -0.00021337405
  %v643 = vmul.f32 %v639, %v579
  %v644 = vmul.f32 %v640, %v580
  %v645 = vmul.f32 %v641, %v581
  %v646 = vmul.f32 %v642, %v582
  %v647 = vadd.f32 %v643, -0.001682827
  %v648 = vadd.f32 %v644, -0.001682827
  %v649 = vadd.f32 %v645, -0.001682827
  %v650 = vadd.f32 %v646, -0.001682827
  %v651 = vmul.f32 %v647, %v579
  %v652 = vmul.f32 %v648, %v580
  %v653 = vmul.f32 %v649, %v581
  %v654 = vmul.f32 %v650, %v582
  %v655 = vadd.f32 %v651, -0.0073733293
  %v656 = vadd.f32 %v652, -0.0073733293
  %v657 = vadd.f32 %v653, -0.0073733293
  %v658 = vadd.f32 %v654, -0.0073733293
  %v659 = vmul.f32 %v655, %v579
  %v660 = vmul.f32 %v656, %v580
  %v661 = vmul.f32 %v657, %v581
  %v662 = vmul.f32 %v658, %v582
  %v663 = vadd.f32 %v659, -0.014264739
  %v664 = vadd.f32 %v660, -0.014264739
  %v665 = vadd.f32 %v661, -0.014264739
  %v666 = vadd.f32 %v662, -0.014264739
  %v667 = vmul.f32 %v563, 0.5
  %v668 = vmul.f32 %v564, 0.5
  %v669 = vmul.f32 %v565, 0.5
  %v670 = vmul.f32 %v566, 0.5
  %v671 = vrcp.pop %v663
  %v672 = vmul.f32 %v663, %v671
  %v673 = vsub.f32 1.0, %v672
  %v674 = vmul.f32 %v671, %v673
  %v675 = vadd.f32 %v671, %v674
  %vm676 = vweird.f32 %v663
  %vm677 = vweird.f32 %v671
  %vm678 = vmor %vm676, %vm677
  %v679 = vsel %vm678, %v671, %v675
  %v680 = vand.u32 2147483647, %v663
  %vm681 = vcmp.eq.f32.partialorder %v680, 8.507059e+37
  %v682 = vand.u32 %v663, 2147483648
  %v683 = vor.u32 1.1754944e-38, %v682
  %v684 = vsel %vm681, %v683, %v679
  %v685 = vmul.f32 %v631, %v684
  %v686 = vrcp.pop %v664
  %v687 = vmul.f32 %v664, %v686
  %v688 = vsub.f32 1.0, %v687
  %v689 = vmul.f32 %v686, %v688
  %v690 = vadd.f32 %v686, %v689
  %vm691 = vweird.f32 %v664
  %vm692 = vweird.f32 %v686
  %vm693 = vmor %vm691, %vm692
  %v694 = vsel %vm693, %v686, %v690
  %v695 = vand.u32 2147483647, %v664
  %vm696 = vcmp.eq.f32.partialorder %v695, 8.507059e+37
  %v697 = vand.u32 %v664, 2147483648
  %v698 = vor.u32 1.1754944e-38, %v697
  %v699 = vsel %vm696, %v698, %v694
  %v700 = vmul.f32 %v632, %v699
  %v701 = vrcp.pop %v665
  %v702 = vmul.f32 %v665, %v701
  %v703 = vsub.f32 1.0, %v702
  %v704 = vmul.f32 %v701, %v703
  %v705 = vadd.f32 %v701, %v704
  %vm706 = vweird.f32 %v665
  %vm707 = vweird.f32 %v701
  %vm708 = vmor %vm706, %vm707
  %v709 = vsel %vm708, %v701, %v705
  %v710 = vand.u32 2147483647, %v665
  %vm711 = vcmp.eq.f32.partialorder %v710, 8.507059e+37
  %v712 = vand.u32 %v665, 2147483648
  %v713 = vor.u32 1.1754944e-38, %v712
  %v714 = vsel %vm711, %v713, %v709
  %v715 = vmul.f32 %v633, %v714
  %v716 = vrcp.pop %v666
  %v717 = vmul.f32 %v666, %v716
  %v718 = vsub.f32 1.0, %v717
  %v719 = vmul.f32 %v716, %v718
  %v720 = vadd.f32 %v716, %v719
  %vm721 = vweird.f32 %v666
  %vm722 = vweird.f32 %v716
  %vm723 = vmor %vm721, %vm722
  %v724 = vsel %vm723, %v716, %v720
  %v725 = vand.u32 2147483647, %v666
  %vm726 = vcmp.eq.f32.partialorder %v725, 8.507059e+37
  %v727 = vand.u32 %v666, 2147483648
  %v728 = vor.u32 1.1754944e-38, %v727
  %v729 = vsel %vm726, %v728, %v724
  %v730 = vmul.f32 %v634, %v729
  %v731 = vadd.f32 %v685, 1.0
  %v732 = vadd.f32 %v700, 1.0
  %v733 = vadd.f32 %v715, 1.0
  %v734 = vadd.f32 %v730, 1.0
  %v735 = vmul.f32 %v667, %v731
  %v736 = vmul.f32 %v668, %v732
  %v737 = vmul.f32 %v669, %v733
  %v738 = vmul.f32 %v670, %v734
  %739 = vmatpush.msra.mxu0 0.0
  %740 = vmatpush.msra.mxu0 0.0
  %741 = vmatpush.msra.mxu0 0.0
  %742 = vmatpush.msra.mxu0 0.0
  %743 = vmatpush.msra.mxu0 0.0
  %744 = vmatpush.msra.mxu0 0.0
  %745 = vmatpush.msra.mxu0 0.0
  %746 = vmatpush.msra.mxu0 0.0
  %747 = vmatpush.msra.mxu0 0.0
  %748 = vmatpush.msra.mxu0 0.0
  %749 = vmatpush.msra.mxu0 0.0
  %750 = vmatpush.msra.mxu0 0.0
  %751 = vmatpush.msra.mxu0 %v738
  %752 = vmatpush.msra.mxu0 %v737
  %753 = vmatpush.msra.mxu0 %v736
  %754 = vmatpush.msra.mxu0 %v735
  %755 = vmatmul.f32.gmra.mxu0 %v239
  %v756 = vpop.f32.mrf.mxu0
  %v757 = vadd.f32 0.0, %v756
  %758 = vmatmul.f32.gmra.mxu0 %v242
  %v759 = vpop.f32.mrf.mxu0
  %v760 = vadd.f32 0.0, %v759
  %761 = vmatmul.f32.gmra.mxu0 %v245
  %v762 = vpop.f32.mrf.mxu0
  %v763 = vadd.f32 0.0, %v762
  %764 = vmatmul.f32.gmra.mxu0 %v248
  %v765 = vpop.f32.mrf.mxu0
  %v766 = vadd.f32 0.0, %v765
  %767 = vdwg.mxu0
  %768 = vmatpush.msra.mxu0 0.0
  %769 = vmatpush.msra.mxu0 0.0
  %770 = vmatpush.msra.mxu0 0.0
  %771 = vmatpush.msra.mxu0 0.0
  %772 = vmatpush.msra.mxu0 0.0
  %773 = vmatpush.msra.mxu0 0.0
  %774 = vmatpush.msra.mxu0 0.0
  %775 = vmatpush.msra.mxu0 0.0
  %776 = vmatpush.msra.mxu0 0.0
  %777 = vmatpush.msra.mxu0 0.0
  %778 = vmatpush.msra.mxu0 0.0
  %779 = vmatpush.msra.mxu0 0.0
  %780 = vmatpush.msra.mxu0 %v738
  %781 = vmatpush.msra.mxu0 %v737
  %782 = vmatpush.msra.mxu0 %v736
  %783 = vmatpush.msra.mxu0 %v735
  %784 = vmatmul.f32.gmra.mxu0 %v280
  %v785 = vpop.f32.mrf.mxu0
  %v786 = vadd.f32 0.0, %v785
  %787 = vmatmul.f32.gmra.mxu0 %v283
  %v788 = vpop.f32.mrf.mxu0
  %v789 = vadd.f32 0.0, %v788
  %790 = vmatmul.f32.gmra.mxu0 %v286
  %v791 = vpop.f32.mrf.mxu0
  %v792 = vadd.f32 0.0, %v791
  %793 = vmatmul.f32.gmra.mxu0 %v289
  %v794 = vpop.f32.mrf.mxu0
  %v795 = vadd.f32 0.0, %v794
  %796 = vdwg.mxu0
  %s797 = scalar_lea.vmem %s8, 384
  %v798 = vld [vmem:[%s797] sm:$0xff]
  %v799 = vld [vmem:[%s797 + $0x8] sm:$0xff]
  %v800 = vld [vmem:[%s797 + $0x10] sm:$0xff]
  %v801 = vld [vmem:[%s797 + $0x18] sm:$0xff]
  %v802 = vld [vmem:[%s797 + $0x20] sm:$0xff]
  %v803 = vld [vmem:[%s797 + $0x28] sm:$0xff]
  %v804 = vld [vmem:[%s797 + $0x30] sm:$0xff]
  %v805 = vld [vmem:[%s797 + $0x38] sm:$0xff]
  %v806 = vld [vmem:[%s797 + $0x40] sm:$0xff]
  %v807 = vld [vmem:[%s797 + $0x48] sm:$0xff]
  %v808 = vld [vmem:[%s797 + $0x50] sm:$0xff]
  %v809 = vld [vmem:[%s797 + $0x58] sm:$0xff]
  %v810 = vld [vmem:[%s797 + $0x60] sm:$0xff]
  %v811 = vld [vmem:[%s797 + $0x68] sm:$0xff]
  %v812 = vld [vmem:[%s797 + $0x70] sm:$0xff]
  %v813 = vld [vmem:[%s797 + $0x78] sm:$0xff]
  %s814 = scalar_lea.vmem %s8, 512
  %v815 = vld [vmem:[%s814] sm:$0xff]
  %v816 = vld [vmem:[%s814 + $0x8] sm:$0xff]
  %v817 = vld [vmem:[%s814 + $0x10] sm:$0xff]
  %v818 = vld [vmem:[%s814 + $0x18] sm:$0xff]
  %v819 = vld [vmem:[%s814 + $0x20] sm:$0xff]
  %v820 = vld [vmem:[%s814 + $0x28] sm:$0xff]
  %v821 = vld [vmem:[%s814 + $0x30] sm:$0xff]
  %v822 = vld [vmem:[%s814 + $0x38] sm:$0xff]
  %v823 = vld [vmem:[%s814 + $0x40] sm:$0xff]
  %v824 = vld [vmem:[%s814 + $0x48] sm:$0xff]
  %v825 = vld [vmem:[%s814 + $0x50] sm:$0xff]
  %v826 = vld [vmem:[%s814 + $0x58] sm:$0xff]
  %v827 = vld [vmem:[%s814 + $0x60] sm:$0xff]
  %v828 = vld [vmem:[%s814 + $0x68] sm:$0xff]
  %v829 = vld [vmem:[%s814 + $0x70] sm:$0xff]
  %v830 = vld [vmem:[%s814 + $0x78] sm:$0xff]
  %831 = vmatpush.msra.mxu0 %v830
  %832 = vmatpush.msra.mxu0 %v829
  %833 = vmatpush.msra.mxu0 %v828
  %834 = vmatpush.msra.mxu0 %v827
  %835 = vmatpush.msra.mxu0 %v826
  %836 = vmatpush.msra.mxu0 %v825
  %837 = vmatpush.msra.mxu0 %v824
  %838 = vmatpush.msra.mxu0 %v823
  %839 = vmatpush.msra.mxu0 %v822
  %840 = vmatpush.msra.mxu0 %v821
  %841 = vmatpush.msra.mxu0 %v820
  %842 = vmatpush.msra.mxu0 %v819
  %843 = vmatpush.msra.mxu0 %v818
  %844 = vmatpush.msra.mxu0 %v817
  %845 = vmatpush.msra.mxu0 %v816
  %846 = vmatpush.msra.mxu0 %v815
  %847 = vmatmul.f32.gmra.mxu0 %v735
  %v848 = vpop.f32.mrf.mxu0
  %v849 = vadd.f32 0.0, %v848
  %850 = vmatmul.f32.gmra.mxu0 %v736
  %v851 = vpop.f32.mrf.mxu0
  %v852 = vadd.f32 0.0, %v851
  %853 = vmatmul.f32.gmra.mxu0 %v737
  %v854 = vpop.f32.mrf.mxu0
  %v855 = vadd.f32 0.0, %v854
  %856 = vmatmul.f32.gmra.mxu0 %v738
  %v857 = vpop.f32.mrf.mxu0
  %v858 = vadd.f32 0.0, %v857
  %859 = vdwg.mxu0
  %860 = vmatpush.msra.mxu0 %v813
  %861 = vmatpush.msra.mxu0 %v812
  %862 = vmatpush.msra.mxu0 %v811
  %863 = vmatpush.msra.mxu0 %v810
  %864 = vmatpush.msra.mxu0 %v809
  %865 = vmatpush.msra.mxu0 %v808
  %866 = vmatpush.msra.mxu0 %v807
  %867 = vmatpush.msra.mxu0 %v806
  %868 = vmatpush.msra.mxu0 %v805
  %869 = vmatpush.msra.mxu0 %v804
  %870 = vmatpush.msra.mxu0 %v803
  %871 = vmatpush.msra.mxu0 %v802
  %872 = vmatpush.msra.mxu0 %v801
  %873 = vmatpush.msra.mxu0 %v800
  %874 = vmatpush.msra.mxu0 %v799
  %875 = vmatpush.msra.mxu0 %v798
  %876 = vmatmul.f32.gmra.mxu0 %v757
  %v877 = vpop.f32.mrf.mxu0
  %v878 = vadd.f32 %v849, %v877
  %879 = vmatmul.f32.gmra.mxu0 %v760
  %v880 = vpop.f32.mrf.mxu0
  %v881 = vadd.f32 %v852, %v880
  %882 = vmatmul.f32.gmra.mxu0 %v763
  %v883 = vpop.f32.mrf.mxu0
  %v884 = vadd.f32 %v855, %v883
  %885 = vmatmul.f32.gmra.mxu0 %v766
  %v886 = vpop.f32.mrf.mxu0
  %v887 = vadd.f32 %v858, %v886
  %888 = vdwg.mxu0
  %s889 = scalar_lea.vmem %s8, 640
  %v890 = vld [vmem:[%s889] sm:$0xff]
  %v891 = vld [vmem:[%s889 + $0x8] sm:$0xff]
  %v892 = vld [vmem:[%s889 + $0x10] sm:$0xff]
  %v893 = vld [vmem:[%s889 + $0x18] sm:$0xff]
  %v894 = vld [vmem:[%s889 + $0x20] sm:$0xff]
  %v895 = vld [vmem:[%s889 + $0x28] sm:$0xff]
  %v896 = vld [vmem:[%s889 + $0x30] sm:$0xff]
  %v897 = vld [vmem:[%s889 + $0x38] sm:$0xff]
  %v898 = vld [vmem:[%s889 + $0x40] sm:$0xff]
  %v899 = vld [vmem:[%s889 + $0x48] sm:$0xff]
  %v900 = vld [vmem:[%s889 + $0x50] sm:$0xff]
  %v901 = vld [vmem:[%s889 + $0x58] sm:$0xff]
  %v902 = vld [vmem:[%s889 + $0x60] sm:$0xff]
  %v903 = vld [vmem:[%s889 + $0x68] sm:$0xff]
  %v904 = vld [vmem:[%s889 + $0x70] sm:$0xff]
  %v905 = vld [vmem:[%s889 + $0x78] sm:$0xff]
  %906 = vmatpush.msra.mxu0 %v905
  %907 = vmatpush.msra.mxu0 %v904
  %908 = vmatpush.msra.mxu0 %v903
  %909 = vmatpush.msra.mxu0 %v902
  %910 = vmatpush.msra.mxu0 %v901
  %911 = vmatpush.msra.mxu0 %v900
  %912 = vmatpush.msra.mxu0 %v899
  %913 = vmatpush.msra.mxu0 %v898
  %914 = vmatpush.msra.mxu0 %v897
  %915 = vmatpush.msra.mxu0 %v896
  %916 = vmatpush.msra.mxu0 %v895
  %917 = vmatpush.msra.mxu0 %v894
  %918 = vmatpush.msra.mxu0 %v893
  %919 = vmatpush.msra.mxu0 %v892
  %920 = vmatpush.msra.mxu0 %v891
  %921 = vmatpush.msra.mxu0 %v890
  %922 = vmatmul.f32.gmra.mxu0 %v786
  %v923 = vpop.f32.mrf.mxu0
  %v924 = vadd.f32 0.0, %v923
  %925 = vmatmul.f32.gmra.mxu0 %v789
  %v926 = vpop.f32.mrf.mxu0
  %v927 = vadd.f32 0.0, %v926
  %928 = vmatmul.f32.gmra.mxu0 %v792
  %v929 = vpop.f32.mrf.mxu0
  %v930 = vadd.f32 0.0, %v929
  %931 = vmatmul.f32.gmra.mxu0 %v795
  %v932 = vpop.f32.mrf.mxu0
  %v933 = vadd.f32 0.0, %v932
  %934 = vdwg.mxu0
  %v935 = vadd.f32 %v878, %v924
  %v936 = vadd.f32 %v881, %v927
  %v937 = vadd.f32 %v884, %v930
  %v938 = vadd.f32 %v887, %v933
  %939 = vmatpush.msra.mxu0 %v234
  %940 = vmatpush.msra.mxu0 %v233
  %941 = vmatpush.msra.mxu0 %v232
  %942 = vmatpush.msra.mxu0 %v231
  %943 = vmatpush.msra.mxu0 %v230
  %944 = vmatpush.msra.mxu0 %v229
  %945 = vmatpush.msra.mxu0 %v228
  %946 = vmatpush.msra.mxu0 %v227
  %947 = vmatpush.msra.mxu0 %v226
  %948 = vmatpush.msra.mxu0 %v225
  %949 = vmatpush.msra.mxu0 %v224
  %950 = vmatpush.msra.mxu0 %v223
  %951 = vmatpush.msra.mxu0 %v222
  %952 = vmatpush.msra.mxu0 %v221
  %953 = vmatpush.msra.mxu0 %v220
  %954 = vmatpush.msra.mxu0 %v219
  %955 = vmatmul.f32.gmra.mxu0 %v935
  %v956 = vpop.f32.mrf.mxu0
  %v957 = vadd.f32 0.0, %v956
  %958 = vmatmul.f32.gmra.mxu0 %v936
  %v959 = vpop.f32.mrf.mxu0
  %v960 = vadd.f32 0.0, %v959
  %961 = vmatmul.f32.gmra.mxu0 %v937
  %v962 = vpop.f32.mrf.mxu0
  %v963 = vadd.f32 0.0, %v962
  %964 = vmatmul.f32.gmra.mxu0 %v938
  %v965 = vpop.f32.mrf.mxu0
  %v966 = vadd.f32 0.0, %v965
  %967 = vdwg.mxu0
  %v968 = vadd.f32 %v957, %v960
  %v969 = vadd.f32 %v968, %v963
  %v970 = vadd.f32 %v969, %v966
  %v971 = vrot.slane %v970, 4
  %v972 = vadd.f32 %v970, %v971
  %v973 = vrot.slane %v972, 2
  %v974 = vadd.f32 %v972, %v973
  %v975 = vrot.slane %v974, 1
  %v976 = vadd.f32 %v974, %v975
  %v977 = vmul.f32 %v935, %v935
  %v978 = vmul.f32 %v936, %v936
  %v979 = vmul.f32 %v937, %v937
  %v980 = vmul.f32 %v938, %v938
  %981 = vmatpush.msra.mxu0 %v234
  %982 = vmatpush.msra.mxu0 %v233
  %983 = vmatpush.msra.mxu0 %v232
  %984 = vmatpush.msra.mxu0 %v231
  %985 = vmatpush.msra.mxu0 %v230
  %986 = vmatpush.msra.mxu0 %v229
  %987 = vmatpush.msra.mxu0 %v228
  %988 = vmatpush.msra.mxu0 %v227
  %989 = vmatpush.msra.mxu0 %v226
  %990 = vmatpush.msra.mxu0 %v225
  %991 = vmatpush.msra.mxu0 %v224
  %992 = vmatpush.msra.mxu0 %v223
  %993 = vmatpush.msra.mxu0 %v222
  %994 = vmatpush.msra.mxu0 %v221
  %995 = vmatpush.msra.mxu0 %v220
  %996 = vmatpush.msra.mxu0 %v219
  %997 = vmatmul.f32.gmra.mxu0 %v977
  %v998 = vpop.f32.mrf.mxu0
  %v999 = vadd.f32 0.0, %v998
  %1000 = vmatmul.f32.gmra.mxu0 %v978
  %v1001 = vpop.f32.mrf.mxu0
  %v1002 = vadd.f32 0.0, %v1001
  %1003 = vmatmul.f32.gmra.mxu0 %v979
  %v1004 = vpop.f32.mrf.mxu0
  %v1005 = vadd.f32 0.0, %v1004
  %1006 = vmatmul.f32.gmra.mxu0 %v980
  %v1007 = vpop.f32.mrf.mxu0
  %v1008 = vadd.f32 0.0, %v1007
  %1009 = vdwg.mxu0
  %v1010 = vadd.f32 %v999, %v1002
  %v1011 = vadd.f32 %v1010, %v1005
  %v1012 = vadd.f32 %v1011, %v1008
  %v1013 = vrot.slane %v1012, 4
  %v1014 = vadd.f32 %v1012, %v1013
  %v1015 = vrot.slane %v1014, 2
  %v1016 = vadd.f32 %v1014, %v1015
  %v1017 = vrot.slane %v1016, 1
  %v1018 = vadd.f32 %v1016, %v1017
  %v1019 = vmul.f32 %v976, %v976
  %v1020 = vsub.f32 %v1018, %v1019
  %v1021 = vadd.f32 %v1020, 1e-05
  %v1022 = vrsqrt.pop %v1021
  %v1023 = vmul.f32 %v1022, %v1021
  %v1024 = vmul.f32 %v1023, %v1022
  %v1025 = vmul.f32 0.5, %v1024
  %v1026 = vsub.f32 1.5, %v1025
  %v1027 = vmul.f32 %v1022, %v1026
  %vm1028 = vweird.f32 %v1021
  %vm1029 = vweird.f32 %v1022
  %vm1030 = vmor %vm1028, %vm1029
  %v1031 = vsel %vm1030, %v1022, %v1027
  %v1032 = vmul.f32 %v235, %v1031
  %v1033 = vmul.f32 %v976, %v1032
  %v1034 = vsub.f32 %v236, %v1033
  %v1035 = vperm.slane %v1032, 1
  %v1036 = vmul.f32 %v935, %v1035
  %v1037 = vmul.f32 %v936, %v1035
  %v1038 = vmul.f32 %v937, %v1035
  %v1039 = vmul.f32 %v938, %v1035
  %v1040 = vperm.slane %v1034, 1
  %v1041 = vadd.f32 %v1036, %v1040
  %v1042 = vadd.f32 %v1037, %v1040
  %v1043 = vadd.f32 %v1038, %v1040
  %v1044 = vadd.f32 %v1039, %v1040
  %v1045 = vmul.f32 %v1041, 0.70710677
  %v1046 = vmul.f32 %v1042, 0.70710677
  %v1047 = vmul.f32 %v1043, 0.70710677
  %v1048 = vmul.f32 %v1044, 0.70710677
  %v1049 = vmax.f32 %v1045, -4.0
  %v1050 = vmax.f32 %v1046, -4.0
  %v1051 = vmax.f32 %v1047, -4.0
  %v1052 = vmax.f32 %v1048, -4.0
  %v1053 = vmin.f32 %v1049, 4.0
  %v1054 = vmin.f32 %v1050, 4.0
  %v1055 = vmin.f32 %v1051, 4.0
  %v1056 = vmin.f32 %v1052, 4.0
  %v1057 = vmul.f32 %v1053, %v1053
  %v1058 = vmul.f32 %v1054, %v1054
  %v1059 = vmul.f32 %v1055, %v1055
  %v1060 = vmul.f32 %v1056, %v1056
  %v1061 = vmul.f32 %v1057, -2.7261424e-10
  %v1062 = vmul.f32 %v1058, -2.7261424e-10
  %v1063 = vmul.f32 %v1059, -2.7261424e-10
  %v1064 = vmul.f32 %v1060, -2.7261424e-10
  %v1065 = vadd.f32 %v1061, 2.7706815e-08
  %v1066 = vadd.f32 %v1062, 2.7706815e-08
  %v1067 = vadd.f32 %v1063, 2.7706815e-08
  %v1068 = vadd.f32 %v1064, 2.7706815e-08
  %v1069 = vmul.f32 %v1065, %v1057
  %v1070 = vmul.f32 %v1066, %v1058
  %v1071 = vmul.f32 %v1067, %v1059
  %v1072 = vmul.f32 %v1068, %v1060
  %v1073 = vadd.f32 %v1069, -2.101024e-06
  %v1074 = vadd.f32 %v1070, -2.101024e-06
  %v1075 = vadd.f32 %v1071, -2.101024e-06
  %v1076 = vadd.f32 %v1072, -2.101024e-06
  %v1077 = vmul.f32 %v1073, %v1057
  %v1078 = vmul.f32 %v1074, %v1058
  %v1079 = vmul.f32 %v1075, %v1059
  %v1080 = vmul.f32 %v1076, %v1060
  %v1081 = vadd.f32 %v1077, -5.6925062e-05
  %v1082 = vadd.f32 %v1078, -5.6925062e-05
  %v1083 = vadd.f32 %v1079, -5.6925062e-05
  %v1084 = vadd.f32 %v1080, -5.6925062e-05
  %v1085 = vmul.f32 %v1081, %v1057
  %v1086 = vmul.f32 %v1082, %v1058
  %v1087 = vmul.f32 %v1083, %v1059
  %v1088 = vmul.f32 %v1084, %v1060
  %v1089 = vadd.f32 %v1085, -0.00073499064
  %v1090 = vadd.f32 %v1086, -0.00073499064
  %v1091 = vadd.f32 %v1087, -0.00073499064
  %v1092 = vadd.f32 %v1088, -0.00073499064
  %v1093 = vmul.f32 %v1089, %v1057
  %v1094 = vmul.f32 %v1090, %v1058
  %v1095 = vmul.f32 %v1091, %v1059
  %v1096 = vmul.f32 %v1092, %v1060
  %v1097 = vadd.f32 %v1093, -0.0029546
  %v1098 = vadd.f32 %v1094, -0.0029546
  %v1099 = vadd.f32 %v1095, -0.0029546
  %v1100 = vadd.f32 %v1096, -0.0029546
  %v1101 = vmul.f32 %v1097, %v1057
  %v1102 = vmul.f32 %v1098, %v1058
  %v1103 = vmul.f32 %v1099, %v1059
  %v1104 = vmul.f32 %v1100, %v1060
  %v1105 = vadd.f32 %v1101, -0.016096033
  %v1106 = vadd.f32 %v1102, -0.016096033
  %v1107 = vadd.f32 %v1103, -0.016096033
  %v1108 = vadd.f32 %v1104, -0.016096033
  %v1109 = vmul.f32 %v1105, %v1053
  %v1110 = vmul.f32 %v1106, %v1054
  %v1111 = vmul.f32 %v1107, %v1055
  %v1112 = vmul.f32 %v1108, %v1056
  %v1113 = vmul.f32 %v1057, -1.45660715e-05
  %v1114 = vmul.f32 %v1058, -1.45660715e-05
  %v1115 = vmul.f32 %v1059, -1.45660715e-05
  %v1116 = vmul.f32 %v1060, -1.45660715e-05
  %v1117 = vadd.f32 %v1113, -0.00021337405
  %v1118 = vadd.f32 %v1114, -0.00021337405
  %v1119 = vadd.f32 %v1115, -0.00021337405
  %v1120 = vadd.f32 %v1116, -0.00021337405
  %v1121 = vmul.f32 %v1117, %v1057
  %v1122 = vmul.f32 %v1118, %v1058
  %v1123 = vmul.f32 %v1119, %v1059
  %v1124 = vmul.f32 %v1120, %v1060
  %v1125 = vadd.f32 %v1121, -0.001682827
  %v1126 = vadd.f32 %v1122, -0.001682827
  %v1127 = vadd.f32 %v1123, -0.001682827
  %v1128 = vadd.f32 %v1124, -0.001682827
  %v1129 = vmul.f32 %v1125, %v1057
  %v1130 = vmul.f32 %v1126, %v1058
  %v1131 = vmul.f32 %v1127, %v1059
  %v1132 = vmul.f32 %v1128, %v1060
  %v1133 = vadd.f32 %v1129, -0.0073733293
  %v1134 = vadd.f32 %v1130, -0.0073733293
  %v1135 = vadd.f32 %v1131, -0.0073733293
  %v1136 = vadd.f32 %v1132, -0.0073733293
  %v1137 = vmul.f32 %v1133, %v1057
  %v1138 = vmul.f32 %v1134, %v1058
  %v1139 = vmul.f32 %v1135, %v1059
  %v1140 = vmul.f32 %v1136, %v1060
  %v1141 = vadd.f32 %v1137, -0.014264739
  %v1142 = vadd.f32 %v1138, -0.014264739
  %v1143 = vadd.f32 %v1139, -0.014264739
  %v1144 = vadd.f32 %v1140, -0.014264739
  %v1145 = vmul.f32 %v1041, 0.5
  %v1146 = vmul.f32 %v1042, 0.5
  %v1147 = vmul.f32 %v1043, 0.5
  %v1148 = vmul.f32 %v1044, 0.5
  %v1149 = vrcp.pop %v1141
  %v1150 = vmul.f32 %v1141, %v1149
  %v1151 = vsub.f32 1.0, %v1150
  %v1152 = vmul.f32 %v1149, %v1151
  %v1153 = vadd.f32 %v1149, %v1152
  %vm1154 = vweird.f32 %v1141
  %vm1155 = vweird.f32 %v1149
  %vm1156 = vmor %vm1154, %vm1155
  %v1157 = vsel %vm1156, %v1149, %v1153
  %v1158 = vand.u32 2147483647, %v1141
  %vm1159 = vcmp.eq.f32.partialorder %v1158, 8.507059e+37
  %v1160 = vand.u32 %v1141, 2147483648
  %v1161 = vor.u32 1.1754944e-38, %v1160
  %v1162 = vsel %vm1159, %v1161, %v1157
  %v1163 = vmul.f32 %v1109, %v1162
  %v1164 = vrcp.pop %v1142
  %v1165 = vmul.f32 %v1142, %v1164
  %v1166 = vsub.f32 1.0, %v1165
  %v1167 = vmul.f32 %v1164, %v1166
  %v1168 = vadd.f32 %v1164, %v1167
  %vm1169 = vweird.f32 %v1142
  %vm1170 = vweird.f32 %v1164
  %vm1171 = vmor %vm1169, %vm1170
  %v1172 = vsel %vm1171, %v1164, %v1168
  %v1173 = vand.u32 2147483647, %v1142
  %vm1174 = vcmp.eq.f32.partialorder %v1173, 8.507059e+37
  %v1175 = vand.u32 %v1142, 2147483648
  %v1176 = vor.u32 1.1754944e-38, %v1175
  %v1177 = vsel %vm1174, %v1176, %v1172
  %v1178 = vmul.f32 %v1110, %v1177
  %v1179 = vrcp.pop %v1143
  %v1180 = vmul.f32 %v1143, %v1179
  %v1181 = vsub.f32 1.0, %v1180
  %v1182 = vmul.f32 %v1179, %v1181
  %v1183 = vadd.f32 %v1179, %v1182
  %vm1184 = vweird.f32 %v1143
  %vm1185 = vweird.f32 %v1179
  %vm1186 = vmor %vm1184, %vm1185
  %v1187 = vsel %vm1186, %v1179, %v1183
  %v1188 = vand.u32 2147483647, %v1143
  %vm1189 = vcmp.eq.f32.partialorder %v1188, 8.507059e+37
  %v1190 = vand.u32 %v1143, 2147483648
  %v1191 = vor.u32 1.1754944e-38, %v1190
  %v1192 = vsel %vm1189, %v1191, %v1187
  %v1193 = vmul.f32 %v1111, %v1192
  %v1194 = vrcp.pop %v1144
  %v1195 = vmul.f32 %v1144, %v1194
  %v1196 = vsub.f32 1.0, %v1195
  %v1197 = vmul.f32 %v1194, %v1196
  %v1198 = vadd.f32 %v1194, %v1197
  %vm1199 = vweird.f32 %v1144
  %vm1200 = vweird.f32 %v1194
  %vm1201 = vmor %vm1199, %vm1200
  %v1202 = vsel %vm1201, %v1194, %v1198
  %v1203 = vand.u32 2147483647, %v1144
  %vm1204 = vcmp.eq.f32.partialorder %v1203, 8.507059e+37
  %v1205 = vand.u32 %v1144, 2147483648
  %v1206 = vor.u32 1.1754944e-38, %v1205
  %v1207 = vsel %vm1204, %v1206, %v1202
  %v1208 = vmul.f32 %v1112, %v1207
  %v1209 = vadd.f32 %v1163, 1.0
  %v1210 = vadd.f32 %v1178, 1.0
  %v1211 = vadd.f32 %v1193, 1.0
  %v1212 = vadd.f32 %v1208, 1.0
  %v1213 = vmul.f32 %v1145, %v1209
  %v1214 = vmul.f32 %v1146, %v1210
  %v1215 = vmul.f32 %v1147, %v1211
  %v1216 = vmul.f32 %v1148, %v1212
  %1217 = vmatpush.msra.mxu0 0.0
  %1218 = vmatpush.msra.mxu0 0.0
  %1219 = vmatpush.msra.mxu0 0.0
  %1220 = vmatpush.msra.mxu0 0.0
  %1221 = vmatpush.msra.mxu0 0.0
  %1222 = vmatpush.msra.mxu0 0.0
  %1223 = vmatpush.msra.mxu0 0.0
  %1224 = vmatpush.msra.mxu0 0.0
  %1225 = vmatpush.msra.mxu0 0.0
  %1226 = vmatpush.msra.mxu0 0.0
  %1227 = vmatpush.msra.mxu0 0.0
  %1228 = vmatpush.msra.mxu0 0.0
  %1229 = vmatpush.msra.mxu0 %v1216
  %1230 = vmatpush.msra.mxu0 %v1215
  %1231 = vmatpush.msra.mxu0 %v1214
  %1232 = vmatpush.msra.mxu0 %v1213
  %1233 = vmatmul.f32.gmra.mxu0 %v239
  %v1234 = vpop.f32.mrf.mxu0
  %v1235 = vadd.f32 0.0, %v1234
  %1236 = vmatmul.f32.gmra.mxu0 %v242
  %v1237 = vpop.f32.mrf.mxu0
  %v1238 = vadd.f32 0.0, %v1237
  %1239 = vmatmul.f32.gmra.mxu0 %v245
  %v1240 = vpop.f32.mrf.mxu0
  %v1241 = vadd.f32 0.0, %v1240
  %1242 = vmatmul.f32.gmra.mxu0 %v248
  %v1243 = vpop.f32.mrf.mxu0
  %v1244 = vadd.f32 0.0, %v1243
  %1245 = vdwg.mxu0
  %1246 = vmatpush.msra.mxu0 0.0
  %1247 = vmatpush.msra.mxu0 0.0
  %1248 = vmatpush.msra.mxu0 0.0
  %1249 = vmatpush.msra.mxu0 0.0
  %1250 = vmatpush.msra.mxu0 0.0
  %1251 = vmatpush.msra.mxu0 0.0
  %1252 = vmatpush.msra.mxu0 0.0
  %1253 = vmatpush.msra.mxu0 0.0
  %1254 = vmatpush.msra.mxu0 0.0
  %1255 = vmatpush.msra.mxu0 0.0
  %1256 = vmatpush.msra.mxu0 0.0
  %1257 = vmatpush.msra.mxu0 0.0
  %1258 = vmatpush.msra.mxu0 %v1216
  %1259 = vmatpush.msra.mxu0 %v1215
  %1260 = vmatpush.msra.mxu0 %v1214
  %1261 = vmatpush.msra.mxu0 %v1213
  %1262 = vmatmul.f32.gmra.mxu0 %v280
  %v1263 = vpop.f32.mrf.mxu0
  %v1264 = vadd.f32 0.0, %v1263
  %1265 = vmatmul.f32.gmra.mxu0 %v283
  %v1266 = vpop.f32.mrf.mxu0
  %v1267 = vadd.f32 0.0, %v1266
  %1268 = vmatmul.f32.gmra.mxu0 %v286
  %v1269 = vpop.f32.mrf.mxu0
  %v1270 = vadd.f32 0.0, %v1269
  %1271 = vmatmul.f32.gmra.mxu0 %v289
  %v1272 = vpop.f32.mrf.mxu0
  %v1273 = vadd.f32 0.0, %v1272
  %1274 = vdwg.mxu0
  %s1275 = scalar_lea.vmem %s8, 768
  %v1276 = vld [vmem:[%s1275] sm:$0xff]
  %v1277 = vld [vmem:[%s1275 + $0x8] sm:$0xff]
  %v1278 = vld [vmem:[%s1275 + $0x10] sm:$0xff]
  %v1279 = vld [vmem:[%s1275 + $0x18] sm:$0xff]
  %v1280 = vld [vmem:[%s1275 + $0x20] sm:$0xff]
  %v1281 = vld [vmem:[%s1275 + $0x28] sm:$0xff]
  %v1282 = vld [vmem:[%s1275 + $0x30] sm:$0xff]
  %v1283 = vld [vmem:[%s1275 + $0x38] sm:$0xff]
  %v1284 = vld [vmem:[%s1275 + $0x40] sm:$0xff]
  %v1285 = vld [vmem:[%s1275 + $0x48] sm:$0xff]
  %v1286 = vld [vmem:[%s1275 + $0x50] sm:$0xff]
  %v1287 = vld [vmem:[%s1275 + $0x58] sm:$0xff]
  %v1288 = vld [vmem:[%s1275 + $0x60] sm:$0xff]
  %v1289 = vld [vmem:[%s1275 + $0x68] sm:$0xff]
  %v1290 = vld [vmem:[%s1275 + $0x70] sm:$0xff]
  %v1291 = vld [vmem:[%s1275 + $0x78] sm:$0xff]
  %s1292 = scalar_lea.vmem %s8, 896
  %v1293 = vld [vmem:[%s1292] sm:$0xff]
  %v1294 = vld [vmem:[%s1292 + $0x8] sm:$0xff]
  %v1295 = vld [vmem:[%s1292 + $0x10] sm:$0xff]
  %v1296 = vld [vmem:[%s1292 + $0x18] sm:$0xff]
  %v1297 = vld [vmem:[%s1292 + $0x20] sm:$0xff]
  %v1298 = vld [vmem:[%s1292 + $0x28] sm:$0xff]
  %v1299 = vld [vmem:[%s1292 + $0x30] sm:$0xff]
  %v1300 = vld [vmem:[%s1292 + $0x38] sm:$0xff]
  %v1301 = vld [vmem:[%s1292 + $0x40] sm:$0xff]
  %v1302 = vld [vmem:[%s1292 + $0x48] sm:$0xff]
  %v1303 = vld [vmem:[%s1292 + $0x50] sm:$0xff]
  %v1304 = vld [vmem:[%s1292 + $0x58] sm:$0xff]
  %v1305 = vld [vmem:[%s1292 + $0x60] sm:$0xff]
  %v1306 = vld [vmem:[%s1292 + $0x68] sm:$0xff]
  %v1307 = vld [vmem:[%s1292 + $0x70] sm:$0xff]
  %v1308 = vld [vmem:[%s1292 + $0x78] sm:$0xff]
  %1309 = vmatpush.msra.mxu0 %v1308
  %1310 = vmatpush.msra.mxu0 %v1307
  %1311 = vmatpush.msra.mxu0 %v1306
  %1312 = vmatpush.msra.mxu0 %v1305
  %1313 = vmatpush.msra.mxu0 %v1304
  %1314 = vmatpush.msra.mxu0 %v1303
  %1315 = vmatpush.msra.mxu0 %v1302
  %1316 = vmatpush.msra.mxu0 %v1301
  %1317 = vmatpush.msra.mxu0 %v1300
  %1318 = vmatpush.msra.mxu0 %v1299
  %1319 = vmatpush.msra.mxu0 %v1298
  %1320 = vmatpush.msra.mxu0 %v1297
  %1321 = vmatpush.msra.mxu0 %v1296
  %1322 = vmatpush.msra.mxu0 %v1295
  %1323 = vmatpush.msra.mxu0 %v1294
  %1324 = vmatpush.msra.mxu0 %v1293
  %1325 = vmatmul.f32.gmra.mxu0 %v1213
  %v1326 = vpop.f32.mrf.mxu0
  %v1327 = vadd.f32 0.0, %v1326
  %1328 = vmatmul.f32.gmra.mxu0 %v1214
  %v1329 = vpop.f32.mrf.mxu0
  %v1330 = vadd.f32 0.0, %v1329
  %1331 = vmatmul.f32.gmra.mxu0 %v1215
  %v1332 = vpop.f32.mrf.mxu0
  %v1333 = vadd.f32 0.0, %v1332
  %1334 = vmatmul.f32.gmra.mxu0 %v1216
  %v1335 = vpop.f32.mrf.mxu0
  %v1336 = vadd.f32 0.0, %v1335
  %1337 = vdwg.mxu0
  %1338 = vmatpush.msra.mxu0 %v1291
  %1339 = vmatpush.msra.mxu0 %v1290
  %1340 = vmatpush.msra.mxu0 %v1289
  %1341 = vmatpush.msra.mxu0 %v1288
  %1342 = vmatpush.msra.mxu0 %v1287
  %1343 = vmatpush.msra.mxu0 %v1286
  %1344 = vmatpush.msra.mxu0 %v1285
  %1345 = vmatpush.msra.mxu0 %v1284
  %1346 = vmatpush.msra.mxu0 %v1283
  %1347 = vmatpush.msra.mxu0 %v1282
  %1348 = vmatpush.msra.mxu0 %v1281
  %1349 = vmatpush.msra.mxu0 %v1280
  %1350 = vmatpush.msra.mxu0 %v1279
  %1351 = vmatpush.msra.mxu0 %v1278
  %1352 = vmatpush.msra.mxu0 %v1277
  %1353 = vmatpush.msra.mxu0 %v1276
  %1354 = vmatmul.f32.gmra.mxu0 %v1235
  %v1355 = vpop.f32.mrf.mxu0
  %v1356 = vadd.f32 %v1327, %v1355
  %1357 = vmatmul.f32.gmra.mxu0 %v1238
  %v1358 = vpop.f32.mrf.mxu0
  %v1359 = vadd.f32 %v1330, %v1358
  %1360 = vmatmul.f32.gmra.mxu0 %v1241
  %v1361 = vpop.f32.mrf.mxu0
  %v1362 = vadd.f32 %v1333, %v1361
  %1363 = vmatmul.f32.gmra.mxu0 %v1244
  %v1364 = vpop.f32.mrf.mxu0
  %v1365 = vadd.f32 %v1336, %v1364
  %1366 = vdwg.mxu0
  %s1367 = scalar_lea.vmem %s8, 1024
  %v1368 = vld [vmem:[%s1367] sm:$0xff]
  %v1369 = vld [vmem:[%s1367 + $0x8] sm:$0xff]
  %v1370 = vld [vmem:[%s1367 + $0x10] sm:$0xff]
  %v1371 = vld [vmem:[%s1367 + $0x18] sm:$0xff]
  %v1372 = vld [vmem:[%s1367 + $0x20] sm:$0xff]
  %v1373 = vld [vmem:[%s1367 + $0x28] sm:$0xff]
  %v1374 = vld [vmem:[%s1367 + $0x30] sm:$0xff]
  %v1375 = vld [vmem:[%s1367 + $0x38] sm:$0xff]
  %v1376 = vld [vmem:[%s1367 + $0x40] sm:$0xff]
  %v1377 = vld [vmem:[%s1367 + $0x48] sm:$0xff]
  %v1378 = vld [vmem:[%s1367 + $0x50] sm:$0xff]
  %v1379 = vld [vmem:[%s1367 + $0x58] sm:$0xff]
  %v1380 = vld [vmem:[%s1367 + $0x60] sm:$0xff]
  %v1381 = vld [vmem:[%s1367 + $0x68] sm:$0xff]
  %v1382 = vld [vmem:[%s1367 + $0x70] sm:$0xff]
  %v1383 = vld [vmem:[%s1367 + $0x78] sm:$0xff]
  %1384 = vmatpush.msra.mxu0 %v1383
  %1385 = vmatpush.msra.mxu0 %v1382
  %1386 = vmatpush.msra.mxu0 %v1381
  %1387 = vmatpush.msra.mxu0 %v1380
  %1388 = vmatpush.msra.mxu0 %v1379
  %1389 = vmatpush.msra.mxu0 %v1378
  %1390 = vmatpush.msra.mxu0 %v1377
  %1391 = vmatpush.msra.mxu0 %v1376
  %1392 = vmatpush.msra.mxu0 %v1375
  %1393 = vmatpush.msra.mxu0 %v1374
  %1394 = vmatpush.msra.mxu0 %v1373
  %1395 = vmatpush.msra.mxu0 %v1372
  %1396 = vmatpush.msra.mxu0 %v1371
  %1397 = vmatpush.msra.mxu0 %v1370
  %1398 = vmatpush.msra.mxu0 %v1369
  %1399 = vmatpush.msra.mxu0 %v1368
  %1400 = vmatmul.f32.gmra.mxu0 %v1264
  %v1401 = vpop.f32.mrf.mxu0
  %v1402 = vadd.f32 0.0, %v1401
  %1403 = vmatmul.f32.gmra.mxu0 %v1267
  %v1404 = vpop.f32.mrf.mxu0
  %v1405 = vadd.f32 0.0, %v1404
  %1406 = vmatmul.f32.gmra.mxu0 %v1270
  %v1407 = vpop.f32.mrf.mxu0
  %v1408 = vadd.f32 0.0, %v1407
  %1409 = vmatmul.f32.gmra.mxu0 %v1273
  %v1410 = vpop.f32.mrf.mxu0
  %v1411 = vadd.f32 0.0, %v1410
  %1412 = vdwg.mxu0
  %v1413 = vadd.f32 %v1356, %v1402
  %v1414 = vadd.f32 %v1359, %v1405
  %v1415 = vadd.f32 %v1362, %v1408
  %v1416 = vadd.f32 %v1365, %v1411
  %1417 = vmatpush.msra.mxu0 %v234
  %1418 = vmatpush.msra.mxu0 %v233
  %1419 = vmatpush.msra.mxu0 %v232
  %1420 = vmatpush.msra.mxu0 %v231
  %1421 = vmatpush.msra.mxu0 %v230
  %1422 = vmatpush.msra.mxu0 %v229
  %1423 = vmatpush.msra.mxu0 %v228
  %1424 = vmatpush.msra.mxu0 %v227
  %1425 = vmatpush.msra.mxu0 %v226
  %1426 = vmatpush.msra.mxu0 %v225
  %1427 = vmatpush.msra.mxu0 %v224
  %1428 = vmatpush.msra.mxu0 %v223
  %1429 = vmatpush.msra.mxu0 %v222
  %1430 = vmatpush.msra.mxu0 %v221
  %1431 = vmatpush.msra.mxu0 %v220
  %1432 = vmatpush.msra.mxu0 %v219
  %1433 = vmatmul.f32.gmra.mxu0 %v1413
  %v1434 = vpop.f32.mrf.mxu0
  %v1435 = vadd.f32 0.0, %v1434
  %1436 = vmatmul.f32.gmra.mxu0 %v1414
  %v1437 = vpop.f32.mrf.mxu0
  %v1438 = vadd.f32 0.0, %v1437
  %1439 = vmatmul.f32.gmra.mxu0 %v1415
  %v1440 = vpop.f32.mrf.mxu0
  %v1441 = vadd.f32 0.0, %v1440
  %1442 = vmatmul.f32.gmra.mxu0 %v1416
  %v1443 = vpop.f32.mrf.mxu0
  %v1444 = vadd.f32 0.0, %v1443
  %1445 = vdwg.mxu0
  %v1446 = vadd.f32 %v1435, %v1438
  %v1447 = vadd.f32 %v1446, %v1441
  %v1448 = vadd.f32 %v1447, %v1444
  %v1449 = vrot.slane %v1448, 4
  %v1450 = vadd.f32 %v1448, %v1449
  %v1451 = vrot.slane %v1450, 2
  %v1452 = vadd.f32 %v1450, %v1451
  %v1453 = vrot.slane %v1452, 1
  %v1454 = vadd.f32 %v1452, %v1453
  %v1455 = vmul.f32 %v1413, %v1413
  %v1456 = vmul.f32 %v1414, %v1414
  %v1457 = vmul.f32 %v1415, %v1415
  %v1458 = vmul.f32 %v1416, %v1416
  %1459 = vmatpush.msra.mxu0 %v234
  %1460 = vmatpush.msra.mxu0 %v233
  %1461 = vmatpush.msra.mxu0 %v232
  %1462 = vmatpush.msra.mxu0 %v231
  %1463 = vmatpush.msra.mxu0 %v230
  %1464 = vmatpush.msra.mxu0 %v229
  %1465 = vmatpush.msra.mxu0 %v228
  %1466 = vmatpush.msra.mxu0 %v227
  %1467 = vmatpush.msra.mxu0 %v226
  %1468 = vmatpush.msra.mxu0 %v225
  %1469 = vmatpush.msra.mxu0 %v224
  %1470 = vmatpush.msra.mxu0 %v223
  %1471 = vmatpush.msra.mxu0 %v222
  %1472 = vmatpush.msra.mxu0 %v221
  %1473 = vmatpush.msra.mxu0 %v220
  %1474 = vmatpush.msra.mxu0 %v219
  %1475 = vmatmul.f32.gmra.mxu0 %v1455
  %v1476 = vpop.f32.mrf.mxu0
  %v1477 = vadd.f32 0.0, %v1476
  %1478 = vmatmul.f32.gmra.mxu0 %v1456
  %v1479 = vpop.f32.mrf.mxu0
  %v1480 = vadd.f32 0.0, %v1479
  %1481 = vmatmul.f32.gmra.mxu0 %v1457
  %v1482 = vpop.f32.mrf.mxu0
  %v1483 = vadd.f32 0.0, %v1482
  %1484 = vmatmul.f32.gmra.mxu0 %v1458
  %v1485 = vpop.f32.mrf.mxu0
  %v1486 = vadd.f32 0.0, %v1485
  %1487 = vdwg.mxu0
  %v1488 = vadd.f32 %v1477, %v1480
  %v1489 = vadd.f32 %v1488, %v1483
  %v1490 = vadd.f32 %v1489, %v1486
  %v1491 = vrot.slane %v1490, 4
  %v1492 = vadd.f32 %v1490, %v1491
  %v1493 = vrot.slane %v1492, 2
  %v1494 = vadd.f32 %v1492, %v1493
  %v1495 = vrot.slane %v1494, 1
  %v1496 = vadd.f32 %v1494, %v1495
  %v1497 = vmul.f32 %v1454, %v1454
  %v1498 = vsub.f32 %v1496, %v1497
  %v1499 = vadd.f32 %v1498, 1e-05
  %v1500 = vrsqrt.pop %v1499
  %v1501 = vmul.f32 %v1500, %v1499
  %v1502 = vmul.f32 %v1501, %v1500
  %v1503 = vmul.f32 0.5, %v1502
  %v1504 = vsub.f32 1.5, %v1503
  %v1505 = vmul.f32 %v1500, %v1504
  %vm1506 = vweird.f32 %v1499
  %vm1507 = vweird.f32 %v1500
  %vm1508 = vmor %vm1506, %vm1507
  %v1509 = vsel %vm1508, %v1500, %v1505
  %v1510 = vmul.f32 %v235, %v1509
  %v1511 = vmul.f32 %v1454, %v1510
  %v1512 = vsub.f32 %v236, %v1511
  %v1513 = vperm.slane %v1510, 2
  %v1514 = vmul.f32 %v1413, %v1513
  %v1515 = vmul.f32 %v1414, %v1513
  %v1516 = vmul.f32 %v1415, %v1513
  %v1517 = vmul.f32 %v1416, %v1513
  %v1518 = vperm.slane %v1512, 2
  %v1519 = vadd.f32 %v1514, %v1518
  %v1520 = vadd.f32 %v1515, %v1518
  %v1521 = vadd.f32 %v1516, %v1518
  %v1522 = vadd.f32 %v1517, %v1518
  %v1523 = vmul.f32 %v1519, 0.70710677
  %v1524 = vmul.f32 %v1520, 0.70710677
  %v1525 = vmul.f32 %v1521, 0.70710677
  %v1526 = vmul.f32 %v1522, 0.70710677
  %v1527 = vmax.f32 %v1523, -4.0
  %v1528 = vmax.f32 %v1524, -4.0
  %v1529 = vmax.f32 %v1525, -4.0
  %v1530 = vmax.f32 %v1526, -4.0
  %v1531 = vmin.f32 %v1527, 4.0
  %v1532 = vmin.f32 %v1528, 4.0
  %v1533 = vmin.f32 %v1529, 4.0
  %v1534 = vmin.f32 %v1530, 4.0
  %v1535 = vmul.f32 %v1531, %v1531
  %v1536 = vmul.f32 %v1532, %v1532
  %v1537 = vmul.f32 %v1533, %v1533
  %v1538 = vmul.f32 %v1534, %v1534
  %v1539 = vmul.f32 %v1535, -2.7261424e-10
  %v1540 = vmul.f32 %v1536, -2.7261424e-10
  %v1541 = vmul.f32 %v1537, -2.7261424e-10
  %v1542 = vmul.f32 %v1538, -2.7261424e-10
  %v1543 = vadd.f32 %v1539, 2.7706815e-08
  %v1544 = vadd.f32 %v1540, 2.7706815e-08
  %v1545 = vadd.f32 %v1541, 2.7706815e-08
  %v1546 = vadd.f32 %v1542, 2.7706815e-08
  %v1547 = vmul.f32 %v1543, %v1535
  %v1548 = vmul.f32 %v1544, %v1536
  %v1549 = vmul.f32 %v1545, %v1537
  %v1550 = vmul.f32 %v1546, %v1538
  %v1551 = vadd.f32 %v1547, -2.101024e-06
  %v1552 = vadd.f32 %v1548, -2.101024e-06
  %v1553 = vadd.f32 %v1549, -2.101024e-06
  %v1554 = vadd.f32 %v1550, -2.101024e-06
  %v1555 = vmul.f32 %v1551, %v1535
  %v1556 = vmul.f32 %v1552, %v1536
  %v1557 = vmul.f32 %v1553, %v1537
  %v1558 = vmul.f32 %v1554, %v1538
  %v1559 = vadd.f32 %v1555, -5.6925062e-05
  %v1560 = vadd.f32 %v1556, -5.6925062e-05
  %v1561 = vadd.f32 %v1557, -5.6925062e-05
  %v1562 = vadd.f32 %v1558, -5.6925062e-05
  %v1563 = vmul.f32 %v1559, %v1535
  %v1564 = vmul.f32 %v1560, %v1536
  %v1565 = vmul.f32 %v1561, %v1537
  %v1566 = vmul.f32 %v1562, %v1538
  %v1567 = vadd.f32 %v1563, -0.00073499064
  %v1568 = vadd.f32 %v1564, -0.00073499064
  %v1569 = vadd.f32 %v1565, -0.00073499064
  %v1570 = vadd.f32 %v1566, -0.00073499064
  %v1571 = vmul.f32 %v1567, %v1535
  %v1572 = vmul.f32 %v1568, %v1536
  %v1573 = vmul.f32 %v1569, %v1537
  %v1574 = vmul.f32 %v1570, %v1538
  %v1575 = vadd.f32 %v1571, -0.0029546
  %v1576 = vadd.f32 %v1572, -0.0029546
  %v1577 = vadd.f32 %v1573, -0.0029546
  %v1578 = vadd.f32 %v1574, -0.0029546
  %v1579 = vmul.f32 %v1575, %v1535
  %v1580 = vmul.f32 %v1576, %v1536
  %v1581 = vmul.f32 %v1577, %v1537
  %v1582 = vmul.f32 %v1578, %v1538
  %v1583 = vadd.f32 %v1579, -0.016096033
  %v1584 = vadd.f32 %v1580, -0.016096033
  %v1585 = vadd.f32 %v1581, -0.016096033
  %v1586 = vadd.f32 %v1582, -0.016096033
  %v1587 = vmul.f32 %v1583, %v1531
  %v1588 = vmul.f32 %v1584, %v1532
  %v1589 = vmul.f32 %v1585, %v1533
  %v1590 = vmul.f32 %v1586, %v1534
  %v1591 = vmul.f32 %v1535, -1.45660715e-05
  %v1592 = vmul.f32 %v1536, -1.45660715e-05
  %v1593 = vmul.f32 %v1537, -1.45660715e-05
  %v1594 = vmul.f32 %v1538, -1.45660715e-05
  %v1595 = vadd.f32 %v1591, -0.00021337405
  %v1596 = vadd.f32 %v1592, -0.00021337405
  %v1597 = vadd.f32 %v1593, -0.00021337405
  %v1598 = vadd.f32 %v1594, -0.00021337405
  %v1599 = vmul.f32 %v1595, %v1535
  %v1600 = vmul.f32 %v1596, %v1536
  %v1601 = vmul.f32 %v1597, %v1537
  %v1602 = vmul.f32 %v1598, %v1538
  %v1603 = vadd.f32 %v1599, -0.001682827
  %v1604 = vadd.f32 %v1600, -0.001682827
  %v1605 = vadd.f32 %v1601, -0.001682827
  %v1606 = vadd.f32 %v1602, -0.001682827
  %v1607 = vmul.f32 %v1603, %v1535
  %v1608 = vmul.f32 %v1604, %v1536
  %v1609 = vmul.f32 %v1605, %v1537
  %v1610 = vmul.f32 %v1606, %v1538
  %v1611 = vadd.f32 %v1607, -0.0073733293
  %v1612 = vadd.f32 %v1608, -0.0073733293
  %v1613 = vadd.f32 %v1609, -0.0073733293
  %v1614 = vadd.f32 %v1610, -0.0073733293
  %v1615 = vmul.f32 %v1611, %v1535
  %v1616 = vmul.f32 %v1612, %v1536
  %v1617 = vmul.f32 %v1613, %v1537
  %v1618 = vmul.f32 %v1614, %v1538
  %v1619 = vadd.f32 %v1615, -0.014264739
  %v1620 = vadd.f32 %v1616, -0.014264739
  %v1621 = vadd.f32 %v1617, -0.014264739
  %v1622 = vadd.f32 %v1618, -0.014264739
  %v1623 = vmul.f32 %v1519, 0.5
  %v1624 = vmul.f32 %v1520, 0.5
  %v1625 = vmul.f32 %v1521, 0.5
  %v1626 = vmul.f32 %v1522, 0.5
  %v1627 = vrcp.pop %v1619
  %v1628 = vmul.f32 %v1619, %v1627
  %v1629 = vsub.f32 1.0, %v1628
  %v1630 = vmul.f32 %v1627, %v1629
  %v1631 = vadd.f32 %v1627, %v1630
  %vm1632 = vweird.f32 %v1619
  %vm1633 = vweird.f32 %v1627
  %vm1634 = vmor %vm1632, %vm1633
  %v1635 = vsel %vm1634, %v1627, %v1631
  %v1636 = vand.u32 2147483647, %v1619
  %vm1637 = vcmp.eq.f32.partialorder %v1636, 8.507059e+37
  %v1638 = vand.u32 %v1619, 2147483648
  %v1639 = vor.u32 1.1754944e-38, %v1638
  %v1640 = vsel %vm1637, %v1639, %v1635
  %v1641 = vmul.f32 %v1587, %v1640
  %v1642 = vrcp.pop %v1620
  %v1643 = vmul.f32 %v1620, %v1642
  %v1644 = vsub.f32 1.0, %v1643
  %v1645 = vmul.f32 %v1642, %v1644
  %v1646 = vadd.f32 %v1642, %v1645
  %vm1647 = vweird.f32 %v1620
  %vm1648 = vweird.f32 %v1642
  %vm1649 = vmor %vm1647, %vm1648
  %v1650 = vsel %vm1649, %v1642, %v1646
  %v1651 = vand.u32 2147483647, %v1620
  %vm1652 = vcmp.eq.f32.partialorder %v1651, 8.507059e+37
  %v1653 = vand.u32 %v1620, 2147483648
  %v1654 = vor.u32 1.1754944e-38, %v1653
  %v1655 = vsel %vm1652, %v1654, %v1650
  %v1656 = vmul.f32 %v1588, %v1655
  %v1657 = vrcp.pop %v1621
  %v1658 = vmul.f32 %v1621, %v1657
  %v1659 = vsub.f32 1.0, %v1658
  %v1660 = vmul.f32 %v1657, %v1659
  %v1661 = vadd.f32 %v1657, %v1660
  %vm1662 = vweird.f32 %v1621
  %vm1663 = vweird.f32 %v1657
  %vm1664 = vmor %vm1662, %vm1663
  %v1665 = vsel %vm1664, %v1657, %v1661
  %v1666 = vand.u32 2147483647, %v1621
  %vm1667 = vcmp.eq.f32.partialorder %v1666, 8.507059e+37
  %v1668 = vand.u32 %v1621, 2147483648
  %v1669 = vor.u32 1.1754944e-38, %v1668
  %v1670 = vsel %vm1667, %v1669, %v1665
  %v1671 = vmul.f32 %v1589, %v1670
  %v1672 = vrcp.pop %v1622
  %v1673 = vmul.f32 %v1622, %v1672
  %v1674 = vsub.f32 1.0, %v1673
  %v1675 = vmul.f32 %v1672, %v1674
  %v1676 = vadd.f32 %v1672, %v1675
  %vm1677 = vweird.f32 %v1622
  %vm1678 = vweird.f32 %v1672
  %vm1679 = vmor %vm1677, %vm1678
  %v1680 = vsel %vm1679, %v1672, %v1676
  %v1681 = vand.u32 2147483647, %v1622
  %vm1682 = vcmp.eq.f32.partialorder %v1681, 8.507059e+37
  %v1683 = vand.u32 %v1622, 2147483648
  %v1684 = vor.u32 1.1754944e-38, %v1683
  %v1685 = vsel %vm1682, %v1684, %v1680
  %v1686 = vmul.f32 %v1590, %v1685
  %v1687 = vadd.f32 %v1641, 1.0
  %v1688 = vadd.f32 %v1656, 1.0
  %v1689 = vadd.f32 %v1671, 1.0
  %v1690 = vadd.f32 %v1686, 1.0
  %v1691 = vmul.f32 %v1623, %v1687
  %v1692 = vmul.f32 %v1624, %v1688
  %v1693 = vmul.f32 %v1625, %v1689
  %v1694 = vmul.f32 %v1626, %v1690
  %1695 = vmatpush.msra.mxu0 0.0
  %1696 = vmatpush.msra.mxu0 0.0
  %1697 = vmatpush.msra.mxu0 0.0
  %1698 = vmatpush.msra.mxu0 0.0
  %1699 = vmatpush.msra.mxu0 0.0
  %1700 = vmatpush.msra.mxu0 0.0
  %1701 = vmatpush.msra.mxu0 0.0
  %1702 = vmatpush.msra.mxu0 0.0
  %1703 = vmatpush.msra.mxu0 0.0
  %1704 = vmatpush.msra.mxu0 0.0
  %1705 = vmatpush.msra.mxu0 0.0
  %1706 = vmatpush.msra.mxu0 0.0
  %1707 = vmatpush.msra.mxu0 %v1694
  %1708 = vmatpush.msra.mxu0 %v1693
  %1709 = vmatpush.msra.mxu0 %v1692
  %1710 = vmatpush.msra.mxu0 %v1691
  %1711 = vmatmul.f32.gmra.mxu0 %v239
  %v1712 = vpop.f32.mrf.mxu0
  %v1713 = vadd.f32 0.0, %v1712
  %1714 = vmatmul.f32.gmra.mxu0 %v242
  %v1715 = vpop.f32.mrf.mxu0
  %v1716 = vadd.f32 0.0, %v1715
  %1717 = vmatmul.f32.gmra.mxu0 %v245
  %v1718 = vpop.f32.mrf.mxu0
  %v1719 = vadd.f32 0.0, %v1718
  %1720 = vmatmul.f32.gmra.mxu0 %v248
  %v1721 = vpop.f32.mrf.mxu0
  %v1722 = vadd.f32 0.0, %v1721
  %1723 = vdwg.mxu0
  %1724 = vmatpush.msra.mxu0 0.0
  %1725 = vmatpush.msra.mxu0 0.0
  %1726 = vmatpush.msra.mxu0 0.0
  %1727 = vmatpush.msra.mxu0 0.0
  %1728 = vmatpush.msra.mxu0 0.0
  %1729 = vmatpush.msra.mxu0 0.0
  %1730 = vmatpush.msra.mxu0 0.0
  %1731 = vmatpush.msra.mxu0 0.0
  %1732 = vmatpush.msra.mxu0 0.0
  %1733 = vmatpush.msra.mxu0 0.0
  %1734 = vmatpush.msra.mxu0 0.0
  %1735 = vmatpush.msra.mxu0 0.0
  %1736 = vmatpush.msra.mxu0 %v1694
  %1737 = vmatpush.msra.mxu0 %v1693
  %1738 = vmatpush.msra.mxu0 %v1692
  %1739 = vmatpush.msra.mxu0 %v1691
  %1740 = vmatmul.f32.gmra.mxu0 %v280
  %v1741 = vpop.f32.mrf.mxu0
  %v1742 = vadd.f32 0.0, %v1741
  %1743 = vmatmul.f32.gmra.mxu0 %v283
  %v1744 = vpop.f32.mrf.mxu0
  %v1745 = vadd.f32 0.0, %v1744
  %1746 = vmatmul.f32.gmra.mxu0 %v286
  %v1747 = vpop.f32.mrf.mxu0
  %v1748 = vadd.f32 0.0, %v1747
  %1749 = vmatmul.f32.gmra.mxu0 %v289
  %v1750 = vpop.f32.mrf.mxu0
  %v1751 = vadd.f32 0.0, %v1750
  %1752 = vdwg.mxu0
  %s1753 = scalar_lea.vmem %s8, 1152
  %v1754 = vld [vmem:[%s1753] sm:$0xff]
  %v1755 = vld [vmem:[%s1753 + $0x8] sm:$0xff]
  %v1756 = vld [vmem:[%s1753 + $0x10] sm:$0xff]
  %v1757 = vld [vmem:[%s1753 + $0x18] sm:$0xff]
  %v1758 = vld [vmem:[%s1753 + $0x20] sm:$0xff]
  %v1759 = vld [vmem:[%s1753 + $0x28] sm:$0xff]
  %v1760 = vld [vmem:[%s1753 + $0x30] sm:$0xff]
  %v1761 = vld [vmem:[%s1753 + $0x38] sm:$0xff]
  %v1762 = vld [vmem:[%s1753 + $0x40] sm:$0xff]
  %v1763 = vld [vmem:[%s1753 + $0x48] sm:$0xff]
  %v1764 = vld [vmem:[%s1753 + $0x50] sm:$0xff]
  %v1765 = vld [vmem:[%s1753 + $0x58] sm:$0xff]
  %v1766 = vld [vmem:[%s1753 + $0x60] sm:$0xff]
  %v1767 = vld [vmem:[%s1753 + $0x68] sm:$0xff]
  %v1768 = vld [vmem:[%s1753 + $0x70] sm:$0xff]
  %v1769 = vld [vmem:[%s1753 + $0x78] sm:$0xff]
  %s1770 = scalar_lea.vmem %s8, 1280
  %v1771 = vld [vmem:[%s1770] sm:$0xff]
  %v1772 = vld [vmem:[%s1770 + $0x8] sm:$0xff]
  %v1773 = vld [vmem:[%s1770 + $0x10] sm:$0xff]
  %v1774 = vld [vmem:[%s1770 + $0x18] sm:$0xff]
  %v1775 = vld [vmem:[%s1770 + $0x20] sm:$0xff]
  %v1776 = vld [vmem:[%s1770 + $0x28] sm:$0xff]
  %v1777 = vld [vmem:[%s1770 + $0x30] sm:$0xff]
  %v1778 = vld [vmem:[%s1770 + $0x38] sm:$0xff]
  %v1779 = vld [vmem:[%s1770 + $0x40] sm:$0xff]
  %v1780 = vld [vmem:[%s1770 + $0x48] sm:$0xff]
  %v1781 = vld [vmem:[%s1770 + $0x50] sm:$0xff]
  %v1782 = vld [vmem:[%s1770 + $0x58] sm:$0xff]
  %v1783 = vld [vmem:[%s1770 + $0x60] sm:$0xff]
  %v1784 = vld [vmem:[%s1770 + $0x68] sm:$0xff]
  %v1785 = vld [vmem:[%s1770 + $0x70] sm:$0xff]
  %v1786 = vld [vmem:[%s1770 + $0x78] sm:$0xff]
  %1787 = vmatpush.msra.mxu0 %v1786
  %1788 = vmatpush.msra.mxu0 %v1785
  %1789 = vmatpush.msra.mxu0 %v1784
  %1790 = vmatpush.msra.mxu0 %v1783
  %1791 = vmatpush.msra.mxu0 %v1782
  %1792 = vmatpush.msra.mxu0 %v1781
  %1793 = vmatpush.msra.mxu0 %v1780
  %1794 = vmatpush.msra.mxu0 %v1779
  %1795 = vmatpush.msra.mxu0 %v1778
  %1796 = vmatpush.msra.mxu0 %v1777
  %1797 = vmatpush.msra.mxu0 %v1776
  %1798 = vmatpush.msra.mxu0 %v1775
  %1799 = vmatpush.msra.mxu0 %v1774
  %1800 = vmatpush.msra.mxu0 %v1773
  %1801 = vmatpush.msra.mxu0 %v1772
  %1802 = vmatpush.msra.mxu0 %v1771
  %1803 = vmatmul.f32.gmra.mxu0 %v1691
  %v1804 = vpop.f32.mrf.mxu0
  %v1805 = vadd.f32 0.0, %v1804
  %1806 = vmatmul.f32.gmra.mxu0 %v1692
  %v1807 = vpop.f32.mrf.mxu0
  %v1808 = vadd.f32 0.0, %v1807
  %1809 = vmatmul.f32.gmra.mxu0 %v1693
  %v1810 = vpop.f32.mrf.mxu0
  %v1811 = vadd.f32 0.0, %v1810
  %1812 = vmatmul.f32.gmra.mxu0 %v1694
  %v1813 = vpop.f32.mrf.mxu0
  %v1814 = vadd.f32 0.0, %v1813
  %1815 = vdwg.mxu0
  %1816 = vmatpush.msra.mxu0 %v1769
  %1817 = vmatpush.msra.mxu0 %v1768
  %1818 = vmatpush.msra.mxu0 %v1767
  %1819 = vmatpush.msra.mxu0 %v1766
  %1820 = vmatpush.msra.mxu0 %v1765
  %1821 = vmatpush.msra.mxu0 %v1764
  %1822 = vmatpush.msra.mxu0 %v1763
  %1823 = vmatpush.msra.mxu0 %v1762
  %1824 = vmatpush.msra.mxu0 %v1761
  %1825 = vmatpush.msra.mxu0 %v1760
  %1826 = vmatpush.msra.mxu0 %v1759
  %1827 = vmatpush.msra.mxu0 %v1758
  %1828 = vmatpush.msra.mxu0 %v1757
  %1829 = vmatpush.msra.mxu0 %v1756
  %1830 = vmatpush.msra.mxu0 %v1755
  %1831 = vmatpush.msra.mxu0 %v1754
  %1832 = vmatmul.f32.gmra.mxu0 %v1713
  %v1833 = vpop.f32.mrf.mxu0
  %v1834 = vadd.f32 %v1805, %v1833
  %1835 = vmatmul.f32.gmra.mxu0 %v1716
  %v1836 = vpop.f32.mrf.mxu0
  %v1837 = vadd.f32 %v1808, %v1836
  %1838 = vmatmul.f32.gmra.mxu0 %v1719
  %v1839 = vpop.f32.mrf.mxu0
  %v1840 = vadd.f32 %v1811, %v1839
  %1841 = vmatmul.f32.gmra.mxu0 %v1722
  %v1842 = vpop.f32.mrf.mxu0
  %v1843 = vadd.f32 %v1814, %v1842
  %1844 = vdwg.mxu0
  %s1845 = scalar_lea.vmem %s8, 1408
  %v1846 = vld [vmem:[%s1845] sm:$0xff]
  %v1847 = vld [vmem:[%s1845 + $0x8] sm:$0xff]
  %v1848 = vld [vmem:[%s1845 + $0x10] sm:$0xff]
  %v1849 = vld [vmem:[%s1845 + $0x18] sm:$0xff]
  %v1850 = vld [vmem:[%s1845 + $0x20] sm:$0xff]
  %v1851 = vld [vmem:[%s1845 + $0x28] sm:$0xff]
  %v1852 = vld [vmem:[%s1845 + $0x30] sm:$0xff]
  %v1853 = vld [vmem:[%s1845 + $0x38] sm:$0xff]
  %v1854 = vld [vmem:[%s1845 + $0x40] sm:$0xff]
  %v1855 = vld [vmem:[%s1845 + $0x48] sm:$0xff]
  %v1856 = vld [vmem:[%s1845 + $0x50] sm:$0xff]
  %v1857 = vld [vmem:[%s1845 + $0x58] sm:$0xff]
  %v1858 = vld [vmem:[%s1845 + $0x60] sm:$0xff]
  %v1859 = vld [vmem:[%s1845 + $0x68] sm:$0xff]
  %v1860 = vld [vmem:[%s1845 + $0x70] sm:$0xff]
  %v1861 = vld [vmem:[%s1845 + $0x78] sm:$0xff]
  %1862 = vmatpush.msra.mxu0 %v1861
  %1863 = vmatpush.msra.mxu0 %v1860
  %1864 = vmatpush.msra.mxu0 %v1859
  %1865 = vmatpush.msra.mxu0 %v1858
  %1866 = vmatpush.msra.mxu0 %v1857
  %1867 = vmatpush.msra.mxu0 %v1856
  %1868 = vmatpush.msra.mxu0 %v1855
  %1869 = vmatpush.msra.mxu0 %v1854
  %1870 = vmatpush.msra.mxu0 %v1853
  %1871 = vmatpush.msra.mxu0 %v1852
  %1872 = vmatpush.msra.mxu0 %v1851
  %1873 = vmatpush.msra.mxu0 %v1850
  %1874 = vmatpush.msra.mxu0 %v1849
  %1875 = vmatpush.msra.mxu0 %v1848
  %1876 = vmatpush.msra.mxu0 %v1847
  %1877 = vmatpush.msra.mxu0 %v1846
  %1878 = vmatmul.f32.gmra.mxu0 %v1742
  %v1879 = vpop.f32.mrf.mxu0
  %v1880 = vadd.f32 0.0, %v1879
  %1881 = vmatmul.f32.gmra.mxu0 %v1745
  %v1882 = vpop.f32.mrf.mxu0
  %v1883 = vadd.f32 0.0, %v1882
  %1884 = vmatmul.f32.gmra.mxu0 %v1748
  %v1885 = vpop.f32.mrf.mxu0
  %v1886 = vadd.f32 0.0, %v1885
  %1887 = vmatmul.f32.gmra.mxu0 %v1751
  %v1888 = vpop.f32.mrf.mxu0
  %v1889 = vadd.f32 0.0, %v1888
  %1890 = vdwg.mxu0
  %v1891 = vadd.f32 %v1834, %v1880
  %v1892 = vadd.f32 %v1837, %v1883
  %v1893 = vadd.f32 %v1840, %v1886
  %v1894 = vadd.f32 %v1843, %v1889
  %1895 = vmatpush.msra.mxu0 %v234
  %1896 = vmatpush.msra.mxu0 %v233
  %1897 = vmatpush.msra.mxu0 %v232
  %1898 = vmatpush.msra.mxu0 %v231
  %1899 = vmatpush.msra.mxu0 %v230
  %1900 = vmatpush.msra.mxu0 %v229
  %1901 = vmatpush.msra.mxu0 %v228
  %1902 = vmatpush.msra.mxu0 %v227
  %1903 = vmatpush.msra.mxu0 %v226
  %1904 = vmatpush.msra.mxu0 %v225
  %1905 = vmatpush.msra.mxu0 %v224
  %1906 = vmatpush.msra.mxu0 %v223
  %1907 = vmatpush.msra.mxu0 %v222
  %1908 = vmatpush.msra.mxu0 %v221
  %1909 = vmatpush.msra.mxu0 %v220
  %1910 = vmatpush.msra.mxu0 %v219
  %1911 = vmatmul.f32.gmra.mxu0 %v1891
  %v1912 = vpop.f32.mrf.mxu0
  %v1913 = vadd.f32 0.0, %v1912
  %1914 = vmatmul.f32.gmra.mxu0 %v1892
  %v1915 = vpop.f32.mrf.mxu0
  %v1916 = vadd.f32 0.0, %v1915
  %1917 = vmatmul.f32.gmra.mxu0 %v1893
  %v1918 = vpop.f32.mrf.mxu0
  %v1919 = vadd.f32 0.0, %v1918
  %1920 = vmatmul.f32.gmra.mxu0 %v1894
  %v1921 = vpop.f32.mrf.mxu0
  %v1922 = vadd.f32 0.0, %v1921
  %1923 = vdwg.mxu0
  %v1924 = vadd.f32 %v1913, %v1916
  %v1925 = vadd.f32 %v1924, %v1919
  %v1926 = vadd.f32 %v1925, %v1922
  %v1927 = vrot.slane %v1926, 4
  %v1928 = vadd.f32 %v1926, %v1927
  %v1929 = vrot.slane %v1928, 2
  %v1930 = vadd.f32 %v1928, %v1929
  %v1931 = vrot.slane %v1930, 1
  %v1932 = vadd.f32 %v1930, %v1931
  %v1933 = vmul.f32 %v1891, %v1891
  %v1934 = vmul.f32 %v1892, %v1892
  %v1935 = vmul.f32 %v1893, %v1893
  %v1936 = vmul.f32 %v1894, %v1894
  %1937 = vmatpush.msra.mxu0 %v234
  %1938 = vmatpush.msra.mxu0 %v233
  %1939 = vmatpush.msra.mxu0 %v232
  %1940 = vmatpush.msra.mxu0 %v231
  %1941 = vmatpush.msra.mxu0 %v230
  %1942 = vmatpush.msra.mxu0 %v229
  %1943 = vmatpush.msra.mxu0 %v228
  %1944 = vmatpush.msra.mxu0 %v227
  %1945 = vmatpush.msra.mxu0 %v226
  %1946 = vmatpush.msra.mxu0 %v225
  %1947 = vmatpush.msra.mxu0 %v224
  %1948 = vmatpush.msra.mxu0 %v223
  %1949 = vmatpush.msra.mxu0 %v222
  %1950 = vmatpush.msra.mxu0 %v221
  %1951 = vmatpush.msra.mxu0 %v220
  %1952 = vmatpush.msra.mxu0 %v219
  %1953 = vmatmul.f32.gmra.mxu0 %v1933
  %v1954 = vpop.f32.mrf.mxu0
  %v1955 = vadd.f32 0.0, %v1954
  %1956 = vmatmul.f32.gmra.mxu0 %v1934
  %v1957 = vpop.f32.mrf.mxu0
  %v1958 = vadd.f32 0.0, %v1957
  %1959 = vmatmul.f32.gmra.mxu0 %v1935
  %v1960 = vpop.f32.mrf.mxu0
  %v1961 = vadd.f32 0.0, %v1960
  %1962 = vmatmul.f32.gmra.mxu0 %v1936
  %v1963 = vpop.f32.mrf.mxu0
  %v1964 = vadd.f32 0.0, %v1963
  %1965 = vdwg.mxu0
  %v1966 = vadd.f32 %v1955, %v1958
  %v1967 = vadd.f32 %v1966, %v1961
  %v1968 = vadd.f32 %v1967, %v1964
  %v1969 = vrot.slane %v1968, 4
  %v1970 = vadd.f32 %v1968, %v1969
  %v1971 = vrot.slane %v1970, 2
  %v1972 = vadd.f32 %v1970, %v1971
  %v1973 = vrot.slane %v1972, 1
  %v1974 = vadd.f32 %v1972, %v1973
  %v1975 = vmul.f32 %v1932, %v1932
  %v1976 = vsub.f32 %v1974, %v1975
  %v1977 = vadd.f32 %v1976, 1e-05
  %v1978 = vrsqrt.pop %v1977
  %v1979 = vmul.f32 %v1978, %v1977
  %v1980 = vmul.f32 %v1979, %v1978
  %v1981 = vmul.f32 0.5, %v1980
  %v1982 = vsub.f32 1.5, %v1981
  %v1983 = vmul.f32 %v1978, %v1982
  %vm1984 = vweird.f32 %v1977
  %vm1985 = vweird.f32 %v1978
  %vm1986 = vmor %vm1984, %vm1985
  %v1987 = vsel %vm1986, %v1978, %v1983
  %v1988 = vmul.f32 %v235, %v1987
  %v1989 = vmul.f32 %v1932, %v1988
  %v1990 = vsub.f32 %v236, %v1989
  %v1991 = vperm.slane %v1988, 3
  %v1992 = vmul.f32 %v1891, %v1991
  %v1993 = vmul.f32 %v1892, %v1991
  %v1994 = vmul.f32 %v1893, %v1991
  %v1995 = vmul.f32 %v1894, %v1991
  %v1996 = vperm.slane %v1990, 3
  %v1997 = vadd.f32 %v1992, %v1996
  %v1998 = vadd.f32 %v1993, %v1996
  %v1999 = vadd.f32 %v1994, %v1996
  %v2000 = vadd.f32 %v1995, %v1996
  %v2001 = vmul.f32 %v1997, 0.70710677
  %v2002 = vmul.f32 %v1998, 0.70710677
  %v2003 = vmul.f32 %v1999, 0.70710677
  %v2004 = vmul.f32 %v2000, 0.70710677
  %v2005 = vmax.f32 %v2001, -4.0
  %v2006 = vmax.f32 %v2002, -4.0
  %v2007 = vmax.f32 %v2003, -4.0
  %v2008 = vmax.f32 %v2004, -4.0
  %v2009 = vmin.f32 %v2005, 4.0
  %v2010 = vmin.f32 %v2006, 4.0
  %v2011 = vmin.f32 %v2007, 4.0
  %v2012 = vmin.f32 %v2008, 4.0
  %v2013 = vmul.f32 %v2009, %v2009
  %v2014 = vmul.f32 %v2010, %v2010
  %v2015 = vmul.f32 %v2011, %v2011
  %v2016 = vmul.f32 %v2012, %v2012
  %v2017 = vmul.f32 %v2013, -2.7261424e-10
  %v2018 = vmul.f32 %v2014, -2.7261424e-10
  %v2019 = vmul.f32 %v2015, -2.7261424e-10
  %v2020 = vmul.f32 %v2016, -2.7261424e-10
  %v2021 = vadd.f32 %v2017, 2.7706815e-08
  %v2022 = vadd.f32 %v2018, 2.7706815e-08
  %v2023 = vadd.f32 %v2019, 2.7706815e-08
  %v2024 = vadd.f32 %v2020, 2.7706815e-08
  %v2025 = vmul.f32 %v2021, %v2013
  %v2026 = vmul.f32 %v2022, %v2014
  %v2027 = vmul.f32 %v2023, %v2015
  %v2028 = vmul.f32 %v2024, %v2016
  %v2029 = vadd.f32 %v2025, -2.101024e-06
  %v2030 = vadd.f32 %v2026, -2.101024e-06
  %v2031 = vadd.f32 %v2027, -2.101024e-06
  %v2032 = vadd.f32 %v2028, -2.101024e-06
  %v2033 = vmul.f32 %v2029, %v2013
  %v2034 = vmul.f32 %v2030, %v2014
  %v2035 = vmul.f32 %v2031, %v2015
  %v2036 = vmul.f32 %v2032, %v2016
  %v2037 = vadd.f32 %v2033, -5.6925062e-05
  %v2038 = vadd.f32 %v2034, -5.6925062e-05
  %v2039 = vadd.f32 %v2035, -5.6925062e-05
  %v2040 = vadd.f32 %v2036, -5.6925062e-05
  %v2041 = vmul.f32 %v2037, %v2013
  %v2042 = vmul.f32 %v2038, %v2014
  %v2043 = vmul.f32 %v2039, %v2015
  %v2044 = vmul.f32 %v2040, %v2016
  %v2045 = vadd.f32 %v2041, -0.00073499064
  %v2046 = vadd.f32 %v2042, -0.00073499064
  %v2047 = vadd.f32 %v2043, -0.00073499064
  %v2048 = vadd.f32 %v2044, -0.00073499064
  %v2049 = vmul.f32 %v2045, %v2013
  %v2050 = vmul.f32 %v2046, %v2014
  %v2051 = vmul.f32 %v2047, %v2015
  %v2052 = vmul.f32 %v2048, %v2016
  %v2053 = vadd.f32 %v2049, -0.0029546
  %v2054 = vadd.f32 %v2050, -0.0029546
  %v2055 = vadd.f32 %v2051, -0.0029546
  %v2056 = vadd.f32 %v2052, -0.0029546
  %v2057 = vmul.f32 %v2053, %v2013
  %v2058 = vmul.f32 %v2054, %v2014
  %v2059 = vmul.f32 %v2055, %v2015
  %v2060 = vmul.f32 %v2056, %v2016
  %v2061 = vadd.f32 %v2057, -0.016096033
  %v2062 = vadd.f32 %v2058, -0.016096033
  %v2063 = vadd.f32 %v2059, -0.016096033
  %v2064 = vadd.f32 %v2060, -0.016096033
  %v2065 = vmul.f32 %v2061, %v2009
  %v2066 = vmul.f32 %v2062, %v2010
  %v2067 = vmul.f32 %v2063, %v2011
  %v2068 = vmul.f32 %v2064, %v2012
  %v2069 = vmul.f32 %v2013, -1.45660715e-05
  %v2070 = vmul.f32 %v2014, -1.45660715e-05
  %v2071 = vmul.f32 %v2015, -1.45660715e-05
  %v2072 = vmul.f32 %v2016, -1.45660715e-05
  %v2073 = vadd.f32 %v2069, -0.00021337405
  %v2074 = vadd.f32 %v2070, -0.00021337405
  %v2075 = vadd.f32 %v2071, -0.00021337405
  %v2076 = vadd.f32 %v2072, -0.00021337405
  %v2077 = vmul.f32 %v2073, %v2013
  %v2078 = vmul.f32 %v2074, %v2014
  %v2079 = vmul.f32 %v2075, %v2015
  %v2080 = vmul.f32 %v2076, %v2016
  %v2081 = vadd.f32 %v2077, -0.001682827
  %v2082 = vadd.f32 %v2078, -0.001682827
  %v2083 = vadd.f32 %v2079, -0.001682827
  %v2084 = vadd.f32 %v2080, -0.001682827
  %v2085 = vmul.f32 %v2081, %v2013
  %v2086 = vmul.f32 %v2082, %v2014
  %v2087 = vmul.f32 %v2083, %v2015
  %v2088 = vmul.f32 %v2084, %v2016
  %v2089 = vadd.f32 %v2085, -0.0073733293
  %v2090 = vadd.f32 %v2086, -0.0073733293
  %v2091 = vadd.f32 %v2087, -0.0073733293
  %v2092 = vadd.f32 %v2088, -0.0073733293
  %v2093 = vmul.f32 %v2089, %v2013
  %v2094 = vmul.f32 %v2090, %v2014
  %v2095 = vmul.f32 %v2091, %v2015
  %v2096 = vmul.f32 %v2092, %v2016
  %v2097 = vadd.f32 %v2093, -0.014264739
  %v2098 = vadd.f32 %v2094, -0.014264739
  %v2099 = vadd.f32 %v2095, -0.014264739
  %v2100 = vadd.f32 %v2096, -0.014264739
  %v2101 = vmul.f32 %v1997, 0.5
  %v2102 = vmul.f32 %v1998, 0.5
  %v2103 = vmul.f32 %v1999, 0.5
  %v2104 = vmul.f32 %v2000, 0.5
  %v2105 = vrcp.pop %v2097
  %v2106 = vmul.f32 %v2097, %v2105
  %v2107 = vsub.f32 1.0, %v2106
  %v2108 = vmul.f32 %v2105, %v2107
  %v2109 = vadd.f32 %v2105, %v2108
  %vm2110 = vweird.f32 %v2097
  %vm2111 = vweird.f32 %v2105
  %vm2112 = vmor %vm2110, %vm2111
  %v2113 = vsel %vm2112, %v2105, %v2109
  %v2114 = vand.u32 2147483647, %v2097
  %vm2115 = vcmp.eq.f32.partialorder %v2114, 8.507059e+37
  %v2116 = vand.u32 %v2097, 2147483648
  %v2117 = vor.u32 1.1754944e-38, %v2116
  %v2118 = vsel %vm2115, %v2117, %v2113
  %v2119 = vmul.f32 %v2065, %v2118
  %v2120 = vrcp.pop %v2098
  %v2121 = vmul.f32 %v2098, %v2120
  %v2122 = vsub.f32 1.0, %v2121
  %v2123 = vmul.f32 %v2120, %v2122
  %v2124 = vadd.f32 %v2120, %v2123
  %vm2125 = vweird.f32 %v2098
  %vm2126 = vweird.f32 %v2120
  %vm2127 = vmor %vm2125, %vm2126
  %v2128 = vsel %vm2127, %v2120, %v2124
  %v2129 = vand.u32 2147483647, %v2098
  %vm2130 = vcmp.eq.f32.partialorder %v2129, 8.507059e+37
  %v2131 = vand.u32 %v2098, 2147483648
  %v2132 = vor.u32 1.1754944e-38, %v2131
  %v2133 = vsel %vm2130, %v2132, %v2128
  %v2134 = vmul.f32 %v2066, %v2133
  %v2135 = vrcp.pop %v2099
  %v2136 = vmul.f32 %v2099, %v2135
  %v2137 = vsub.f32 1.0, %v2136
  %v2138 = vmul.f32 %v2135, %v2137
  %v2139 = vadd.f32 %v2135, %v2138
  %vm2140 = vweird.f32 %v2099
  %vm2141 = vweird.f32 %v2135
  %vm2142 = vmor %vm2140, %vm2141
  %v2143 = vsel %vm2142, %v2135, %v2139
  %v2144 = vand.u32 2147483647, %v2099
  %vm2145 = vcmp.eq.f32.partialorder %v2144, 8.507059e+37
  %v2146 = vand.u32 %v2099, 2147483648
  %v2147 = vor.u32 1.1754944e-38, %v2146
  %v2148 = vsel %vm2145, %v2147, %v2143
  %v2149 = vmul.f32 %v2067, %v2148
  %v2150 = vrcp.pop %v2100
  %v2151 = vmul.f32 %v2100, %v2150
  %v2152 = vsub.f32 1.0, %v2151
  %v2153 = vmul.f32 %v2150, %v2152
  %v2154 = vadd.f32 %v2150, %v2153
  %vm2155 = vweird.f32 %v2100
  %vm2156 = vweird.f32 %v2150
  %vm2157 = vmor %vm2155, %vm2156
  %v2158 = vsel %vm2157, %v2150, %v2154
  %v2159 = vand.u32 2147483647, %v2100
  %vm2160 = vcmp.eq.f32.partialorder %v2159, 8.507059e+37
  %v2161 = vand.u32 %v2100, 2147483648
  %v2162 = vor.u32 1.1754944e-38, %v2161
  %v2163 = vsel %vm2160, %v2162, %v2158
  %v2164 = vmul.f32 %v2068, %v2163
  %v2165 = vadd.f32 %v2119, 1.0
  %v2166 = vadd.f32 %v2134, 1.0
  %v2167 = vadd.f32 %v2149, 1.0
  %v2168 = vadd.f32 %v2164, 1.0
  %v2169 = vmul.f32 %v2101, %v2165
  %v2170 = vmul.f32 %v2102, %v2166
  %v2171 = vmul.f32 %v2103, %v2167
  %v2172 = vmul.f32 %v2104, %v2168
  %2173 = vst [vmem:[%s12] sm:$0xff] %v2169
  %2174 = vst [vmem:[%s12 + $0x8] sm:$0xff] %v2170
  %2175 = vst [vmem:[%s12 + $0x10] sm:$0xff] %v2171
  %2176 = vst [vmem:[%s12 + $0x18] sm:$0xff] %v2172
  // Predicated region
  $region50: #{u_decoder_forward.1} parent=0 // pred_check
    _
  $region51: #{u_decoder_forward.1} parent=0 // pred_check_branch
    %2178 = sbr.rel (0) target = $region53
  $region52: #{u_decoder_forward.1} parent=0 // pred_region
    _
  $region53: #{u_decoder_forward.1} parent=0 // pred_fallthru
    _
  // Predicated region
  $region54: #{u_decoder_forward.1} parent=0 // pred_check
    _
  $region55: #{u_decoder_forward.1} parent=0 // pred_check_branch
    %2180 = sbr.rel (0) target = $region57
  $region56: #{u_decoder_forward.1} parent=0 // pred_region
    _
  $region57: #{u_decoder_forward.1} parent=0 // pred_fallthru
    _

</llo_original>
